<compile_context>
chip_gen: v7x
topology: tpu7x:2x2x1
jax: 0.10.0
libtpu: 0.0.40
codegen_flags: <defaults>
</compile_context>

<pallas_src>
import functools

import jax
import jax.numpy as jnp
from jax import lax
from jax.experimental import pallas as pl
from jax.experimental.pallas import tpu as pltpu


def _mhsa_kernel(x_ref, wq_ref, bq_ref, wk_ref, bk_ref, wv_ref, bv_ref, o_ref,
                 *, scale, heads):
    x_f32 = x_ref[0]                              # (C, W), f32
    C, W = x_f32.shape
    hdk = wq_ref.shape[0]
    dk = hdk // heads

    x_bf = x_f32.astype(jnp.bfloat16)

    # --- Stacked projections: one MXU contraction per projection (bf16 in, f32 acc),
    #     single stacked bias add each (Conv1d k=1 == per-position linear over channels).
    q_all = jnp.dot(wq_ref[...].astype(jnp.bfloat16), x_bf,
                    preferred_element_type=jnp.float32) + bq_ref[...]      # (H*dk, W)
    k_all = jnp.dot(wk_ref[...].astype(jnp.bfloat16), x_bf,
                    preferred_element_type=jnp.float32) + bk_ref[...]      # (H*dk, W)
    v_all = jnp.dot(wv_ref[...].astype(jnp.bfloat16), x_bf,
                    preferred_element_type=jnp.float32) + bv_ref[...]      # (H*C, W)

    # Fold the softmax scale into q (dk*W multiplies instead of H*W*W on the scores).
    q = (q_all * scale).reshape(heads, dk, W).astype(jnp.bfloat16)         # (H, dk, W)
    k = k_all.reshape(heads, dk, W).astype(jnp.bfloat16)                   # (H, dk, W)
    v = v_all.reshape(heads, C, W).astype(jnp.bfloat16)                    # (H, C,  W)

    # scores[h, i, j] = sum_d q[h, d, i] * k[h, d, j]   (== bmm(query^T, key) * scale)
    # Transposed contraction via dot_general -- no explicit q.T materialization.
    scores = lax.dot_general(
        q, k, dimension_numbers=(((1,), (1,)), ((0,), (0,))),
        preferred_element_type=jnp.float32)                                # (H, W, W)

    # Numerically-stable softmax along the key axis, all in f32 (VPU/EUP).
    scores = scores - jnp.max(scores, axis=-1, keepdims=True)
    p = jnp.exp(scores)
    attn = p * pl.reciprocal(jnp.sum(p, axis=-1, keepdims=True), approx=True)

    # out[h, c, j] = sum_i v[h, c, i] * attn[h, i, j]   (== bmm(value, attn))
    out_h = lax.dot_general(
        v, attn.astype(jnp.bfloat16),
        dimension_numbers=(((2,), (1,)), ((0,), (0,))),
        preferred_element_type=jnp.float32)                                # (H, C, W)

    # context starts at x and the module returns context + x  =>  2*x baseline.
    o_ref[0] = (2.0 * x_f32 + jnp.sum(out_h, axis=0)).astype(o_ref.dtype)

    # TODO(synk): for large W, tile the (W, W) scores along the key axis
    # (online softmax, flash style) to stay within v7x's 64 MiB VMEM.


def multi_head_self_attention(x, wq, bq, wk, bk, wv, bv, *, scale):
    """x: (B, C, W) f32.  Per-head weights stacked on a leading head axis."""
    B, C, W = x.shape
    H, dk, _ = wq.shape

    # Flatten the head axis into the projection rows (host-side layout plumbing only),
    # so the kernel sees three stacked weight matrices and does one matmul each.
    wq_all = wq.reshape(H * dk, C)
    bq_all = bq.reshape(H * dk, 1)
    wk_all = wk.reshape(H * dk, C)
    bk_all = bk.reshape(H * dk, 1)
    wv_all = wv.reshape(H * C, C)
    bv_all = bv.reshape(H * C, 1)

    kernel = functools.partial(_mhsa_kernel, scale=scale, heads=H)

    grid_spec = pltpu.PrefetchScalarGridSpec(
        num_scalar_prefetch=0,
        grid=(B,),
        in_specs=[
            pl.BlockSpec((1, C, W), lambda b: (b, 0, 0)),        # x[b]
            pl.BlockSpec((H * dk, C), lambda b: (0, 0)),          # Wq (all heads)
            pl.BlockSpec((H * dk, 1), lambda b: (0, 0)),          # bq
            pl.BlockSpec((H * dk, C), lambda b: (0, 0)),          # Wk
            pl.BlockSpec((H * dk, 1), lambda b: (0, 0)),          # bk
            pl.BlockSpec((H * C, C), lambda b: (0, 0)),           # Wv
            pl.BlockSpec((H * C, 1), lambda b: (0, 0)),           # bv
        ],
        out_specs=pl.BlockSpec((1, C, W), lambda b: (b, 0, 0)),
    )

    return pl.pallas_call(
        kernel,
        out_shape=jax.ShapeDtypeStruct((B, C, W), x.dtype),
        grid_spec=grid_spec,
        compiler_params=pltpu.CompilerParams(
            dimension_semantics=("parallel",)),
    )(x, wq_all, bq_all, wk_all, bk_all, wv_all, bv_all)


def reference_mhsa(x, wq, bq, wk, bk, wv, bv, *, scale):
    """Pure-JAX f32 reference reproducing the PyTorch forward semantics."""
    H = wq.shape[0]
    context = x
    for h in range(H):
        q = jnp.einsum('oc,bcw->bow', wq[h], x) + bq[h][None, :, :]   # (B, dk, W)
        k = jnp.einsum('oc,bcw->bow', wk[h], x) + bk[h][None, :, :]   # (B, dk, W)
        v = jnp.einsum('oc,bcw->bow', wv[h], x) + bv[h][None, :, :]   # (B, C, W)
        scores = jnp.einsum('bdq,bdk->bqk', q, k) * scale             # (B, W, W)
        attn = jax.nn.softmax(scores, axis=-1)
        context = context + jnp.einsum('bci,bij->bcj', v, attn)       # (B, C, W)
    return context + x


if __name__ == "__main__":
    # Conv1d input is (B, C, W).  W=128 keeps the output lane-dense (full vregs,
    # unmasked stores) while remaining a small demo shape.
    B, C, W = 2, 32, 128
    HEADS, REDUCTION = 4, 8
    DK = C // REDUCTION
    scale = DK ** (-0.5)

    key = jax.random.PRNGKey(0)
    kx, kwq, kbq, kwk, kbk, kwv, kbv = jax.random.split(key, 7)

    x = jax.random.normal(kx, (B, C, W), dtype=jnp.float32)
    # Deterministic parameter init (synthetic, not a checkpoint load).
    wq = 0.1 * jax.random.normal(kwq, (HEADS, DK, C), dtype=jnp.float32)
    bq = 0.1 * jax.random.normal(kbq, (HEADS, DK, 1), dtype=jnp.float32)
    wk = 0.1 * jax.random.normal(kwk, (HEADS, DK, C), dtype=jnp.float32)
    bk = 0.1 * jax.random.normal(kbk, (HEADS, DK, 1), dtype=jnp.float32)
    wv = 0.1 * jax.random.normal(kwv, (HEADS, C, C), dtype=jnp.float32)
    bv = 0.1 * jax.random.normal(kbv, (HEADS, C, 1), dtype=jnp.float32)

    out = multi_head_self_attention(x, wq, bq, wk, bk, wv, bv, scale=scale)
    out = jax.block_until_ready(out)

    ref = reference_mhsa(x, wq, bq, wk, bk, wv, bv, scale=scale)
    assert out.shape == (B, C, W)
    # bf16 MXU operands (f32 accumulation / softmax) => slightly looser tolerance.
    assert jnp.allclose(out, ref, atol=5e-2, rtol=5e-2), "mismatch vs reference"

    print("KERNEL_OK")
</pallas_src>

<mosaic_0001>
module attributes {stable_mosaic.version = 11 : i64} {
  func.func @_mhsa_kernel(%arg0: i32, %arg1: memref<1x32x128xf32, #tpu.memory_space<vmem>>, %arg2: memref<16x32xf32, #tpu.memory_space<vmem>>, %arg3: memref<16x1xf32, #tpu.memory_space<vmem>>, %arg4: memref<16x32xf32, #tpu.memory_space<vmem>>, %arg5: memref<16x1xf32, #tpu.memory_space<vmem>>, %arg6: memref<128x32xf32, #tpu.memory_space<vmem>>, %arg7: memref<128x1xf32, #tpu.memory_space<vmem>>, %arg8: memref<1x32x128xf32, #tpu.memory_space<vmem>>) attributes {dimension_semantics = [#tpu.dimension_semantics<parallel>], iteration_bounds = array<i64: 2>, scalar_prefetch = 0 : i64, scratch_operands = 0 : i64, tpu.core_type = #tpu.core_type<tc>, window_params = [{transform_indices = @transform_0, window_bounds = array<i64: 1, 32, 128>}, {pipeline_mode = #tpu.pipeline_mode<synchronous>, transform_indices = @transform_1, window_bounds = array<i64: 16, 32>}, {pipeline_mode = #tpu.pipeline_mode<synchronous>, transform_indices = @transform_2, window_bounds = array<i64: 16, 1>}, {pipeline_mode = #tpu.pipeline_mode<synchronous>, transform_indices = @transform_3, window_bounds = array<i64: 16, 32>}, {pipeline_mode = #tpu.pipeline_mode<synchronous>, transform_indices = @transform_4, window_bounds = array<i64: 16, 1>}, {pipeline_mode = #tpu.pipeline_mode<synchronous>, transform_indices = @transform_5, window_bounds = array<i64: 128, 32>}, {pipeline_mode = #tpu.pipeline_mode<synchronous>, transform_indices = @transform_6, window_bounds = array<i64: 128, 1>}, {transform_indices = @transform_7, window_bounds = array<i64: 1, 32, 128>}]} {
    %c0 = arith.constant 0 : index
    %c0_0 = arith.constant 0 : index
    %c0_1 = arith.constant 0 : index
    %0 = vector.load %arg1[%c0, %c0_0, %c0_1] : memref<1x32x128xf32, #tpu.memory_space<vmem>>, vector<1x32x128xf32>
    %1 = vector.shape_cast %0 : vector<1x32x128xf32> to vector<32x128xf32>
    %2 = arith.truncf %1 : vector<32x128xf32> to vector<32x128xbf16>
    %c0_2 = arith.constant 0 : index
    %c0_3 = arith.constant 0 : index
    %3 = vector.load %arg2[%c0_2, %c0_3] : memref<16x32xf32, #tpu.memory_space<vmem>>, vector<16x32xf32>
    %4 = arith.truncf %3 : vector<16x32xf32> to vector<16x32xbf16>
    %cst = arith.constant dense<0.000000e+00> : vector<16x128xf32>
    %5 = tpu.matmul %4, %2, %cst {dimension_numbers = #tpu.dot_dimension_numbers<[1], [0], [0], [1], [0, 0, 1, 1], [], []>} : vector<16x32xbf16>, vector<32x128xbf16>, vector<16x128xf32> -> vector<16x128xf32>
    %c0_4 = arith.constant 0 : index
    %c0_5 = arith.constant 0 : index
    %6 = vector.load %arg3[%c0_4, %c0_5] : memref<16x1xf32, #tpu.memory_space<vmem>>, vector<16x1xf32>
    %7 = vector.broadcast %6 : vector<16x1xf32> to vector<16x128xf32>
    %8 = arith.addf %5, %7 : vector<16x128xf32>
    %c0_6 = arith.constant 0 : index
    %c0_7 = arith.constant 0 : index
    %9 = vector.load %arg4[%c0_6, %c0_7] : memref<16x32xf32, #tpu.memory_space<vmem>>, vector<16x32xf32>
    %10 = arith.truncf %9 : vector<16x32xf32> to vector<16x32xbf16>
    %cst_8 = arith.constant dense<0.000000e+00> : vector<16x128xf32>
    %11 = tpu.matmul %10, %2, %cst_8 {dimension_numbers = #tpu.dot_dimension_numbers<[1], [0], [0], [1], [0, 0, 1, 1], [], []>} : vector<16x32xbf16>, vector<32x128xbf16>, vector<16x128xf32> -> vector<16x128xf32>
    %c0_9 = arith.constant 0 : index
    %c0_10 = arith.constant 0 : index
    %12 = vector.load %arg5[%c0_9, %c0_10] : memref<16x1xf32, #tpu.memory_space<vmem>>, vector<16x1xf32>
    %13 = vector.broadcast %12 : vector<16x1xf32> to vector<16x128xf32>
    %14 = arith.addf %11, %13 : vector<16x128xf32>
    %c0_11 = arith.constant 0 : index
    %c0_12 = arith.constant 0 : index
    %15 = vector.load %arg6[%c0_11, %c0_12] : memref<128x32xf32, #tpu.memory_space<vmem>>, vector<128x32xf32>
    %16 = arith.truncf %15 : vector<128x32xf32> to vector<128x32xbf16>
    %cst_13 = arith.constant dense<0.000000e+00> : vector<128x128xf32>
    %17 = tpu.matmul %16, %2, %cst_13 {dimension_numbers = #tpu.dot_dimension_numbers<[1], [0], [0], [1], [0, 0, 1, 1], [], []>} : vector<128x32xbf16>, vector<32x128xbf16>, vector<128x128xf32> -> vector<128x128xf32>
    %c0_14 = arith.constant 0 : index
    %c0_15 = arith.constant 0 : index
    %18 = vector.load %arg7[%c0_14, %c0_15] : memref<128x1xf32, #tpu.memory_space<vmem>>, vector<128x1xf32>
    %19 = vector.broadcast %18 : vector<128x1xf32> to vector<128x128xf32>
    %20 = arith.addf %17, %19 : vector<128x128xf32>
    %cst_16 = arith.constant 5.000000e-01 : f32
    %21 = vector.broadcast %cst_16 : f32 to vector<16x128xf32>
    %22 = arith.mulf %8, %21 : vector<16x128xf32>
    %23 = vector.shape_cast %22 : vector<16x128xf32> to vector<4x4x128xf32>
    %24 = arith.truncf %23 : vector<4x4x128xf32> to vector<4x4x128xbf16>
    %25 = vector.shape_cast %14 : vector<16x128xf32> to vector<4x4x128xf32>
    %26 = arith.truncf %25 : vector<4x4x128xf32> to vector<4x4x128xbf16>
    %27 = vector.shape_cast %20 : vector<128x128xf32> to vector<4x32x128xf32>
    %28 = arith.truncf %27 : vector<4x32x128xf32> to vector<4x32x128xbf16>
    %cst_17 = arith.constant dense<0.000000e+00> : vector<4x128x128xf32>
    %29 = tpu.matmul %24, %26, %cst_17 {dimension_numbers = #tpu.dot_dimension_numbers<[1], [1], [2], [2], [0, 0, 0, 2, 1, 2], [0], [0]>} : vector<4x4x128xbf16>, vector<4x4x128xbf16>, vector<4x128x128xf32> -> vector<4x128x128xf32>
    %cst_18 = arith.constant dense<0xFF800000> : vector<4x128xf32>
    %30 = vector.multi_reduction <maximumf>, %29, %cst_18 [2] : vector<4x128x128xf32> to vector<4x128xf32>
    %31 = vector.shape_cast %30 : vector<4x128xf32> to vector<4x128x1xf32>
    %32 = vector.broadcast %31 : vector<4x128x1xf32> to vector<4x128x128xf32>
    %33 = arith.subf %29, %32 : vector<4x128x128xf32>
    %34 = math.exp %33 : vector<4x128x128xf32>
    %cst_19 = arith.constant dense<0.000000e+00> : vector<4x128xf32>
    %35 = vector.multi_reduction <add>, %34, %cst_19 [2] : vector<4x128x128xf32> to vector<4x128xf32>
    %36 = vector.shape_cast %35 : vector<4x128xf32> to vector<4x128x1xf32>
    %37 = tpu.reciprocal %36 {approx = true} : vector<4x128x1xf32> -> vector<4x128x1xf32>
    %38 = vector.broadcast %37 : vector<4x128x1xf32> to vector<4x128x128xf32>
    %39 = arith.mulf %34, %38 : vector<4x128x128xf32>
    %40 = arith.truncf %39 : vector<4x128x128xf32> to vector<4x128x128xbf16>
    %cst_20 = arith.constant dense<0.000000e+00> : vector<4x32x128xf32>
    %41 = tpu.matmul %28, %40, %cst_20 {dimension_numbers = #tpu.dot_dimension_numbers<[2], [1], [1], [2], [0, 0, 0, 1, 1, 2], [0], [0]>} : vector<4x32x128xbf16>, vector<4x128x128xbf16>, vector<4x32x128xf32> -> vector<4x32x128xf32>
    %cst_21 = arith.constant 2.000000e+00 : f32
    %42 = vector.broadcast %cst_21 : f32 to vector<32x128xf32>
    %43 = arith.mulf %42, %1 : vector<32x128xf32>
    %cst_22 = arith.constant dense<0.000000e+00> : vector<32x128xf32>
    %44 = vector.multi_reduction <add>, %41, %cst_22 [0] : vector<4x32x128xf32> to vector<32x128xf32>
    %45 = arith.addf %43, %44 : vector<32x128xf32>
    %c0_23 = arith.constant 0 : index
    %c0_24 = arith.constant 0 : index
    %c0_25 = arith.constant 0 : index
    %46 = vector.load %arg8[%c0_23, %c0_24, %c0_25] : memref<1x32x128xf32, #tpu.memory_space<vmem>>, vector<1x32x128xf32>
    %47 = vector.shape_cast %46 : vector<1x32x128xf32> to vector<32x128xf32>
    %48 = vector.shape_cast %45 : vector<32x128xf32> to vector<1x32x128xf32>
    tpu.vector_store %arg8[%c0_23, %c0_24, %c0_25], %48 {strides = array<i32>} : memref<1x32x128xf32, #tpu.memory_space<vmem>>, vector<1x32x128xf32>,
    return
  }
  func.func @transform_0(%arg0: i32) -> (i32, i32, i32) {
    %c0_i32 = arith.constant 0 : i32
    %c0_i32_0 = arith.constant 0 : i32
    %c0_i32_1 = arith.constant 0 : i32
    return %arg0, %c0_i32, %c0_i32_0 : i32, i32, i32
  }
  func.func @transform_1(%arg0: i32) -> (i32, i32) {
    %c0_i32 = arith.constant 0 : i32
    %c0_i32_0 = arith.constant 0 : i32
    %c0_i32_1 = arith.constant 0 : i32
    return %c0_i32, %c0_i32_0 : i32, i32
  }
  func.func @transform_2(%arg0: i32) -> (i32, i32) {
    %c0_i32 = arith.constant 0 : i32
    %c0_i32_0 = arith.constant 0 : i32
    %c0_i32_1 = arith.constant 0 : i32
    return %c0_i32, %c0_i32_0 : i32, i32
  }
  func.func @transform_3(%arg0: i32) -> (i32, i32) {
    %c0_i32 = arith.constant 0 : i32
    %c0_i32_0 = arith.constant 0 : i32
    %c0_i32_1 = arith.constant 0 : i32
    return %c0_i32, %c0_i32_0 : i32, i32
  }
  func.func @transform_4(%arg0: i32) -> (i32, i32) {
    %c0_i32 = arith.constant 0 : i32
    %c0_i32_0 = arith.constant 0 : i32
    %c0_i32_1 = arith.constant 0 : i32
    return %c0_i32, %c0_i32_0 : i32, i32
  }
  func.func @transform_5(%arg0: i32) -> (i32, i32) {
    %c0_i32 = arith.constant 0 : i32
    %c0_i32_0 = arith.constant 0 : i32
    %c0_i32_1 = arith.constant 0 : i32
    return %c0_i32, %c0_i32_0 : i32, i32
  }
  func.func @transform_6(%arg0: i32) -> (i32, i32) {
    %c0_i32 = arith.constant 0 : i32
    %c0_i32_0 = arith.constant 0 : i32
    %c0_i32_1 = arith.constant 0 : i32
    return %c0_i32, %c0_i32_0 : i32, i32
  }
  func.func @transform_7(%arg0: i32) -> (i32, i32, i32) {
    %c0_i32 = arith.constant 0 : i32
    %c0_i32_0 = arith.constant 0 : i32
    %c0_i32_1 = arith.constant 0 : i32
    return %arg0, %c0_i32, %c0_i32_0 : i32, i32, i32
  }
}

</mosaic_0001>

<llo_original>
// kernel: tpu_custom_call.1
$region0: #{tpu_custom_call.1}
  #allocation0 [shape = 'u32[]', space=smem, size = 0x4, offset = 0x4, fixed_abs, tag = 'smem constant byte address 0x4 - core index']
  #allocation1 [shape = 'u32[144,128]{1,0:T(1,128)}', space=vmem, size = 0x12000, scoped, tag = 'internal scratch']
  %s0 = inlined_call_operand.vmem [shape: f32[2,32,128], index: 0, kind: input, shape index: {}]
  %s1 = inlined_call_operand.vmem [shape: f32[16,32], index: 1, kind: input, shape index: {}]
  %s2 = inlined_call_operand.vmem [shape: f32[16,1], index: 2, kind: input, shape index: {}]
  %s3 = inlined_call_operand.vmem [shape: f32[16,32], index: 3, kind: input, shape index: {}]
  %s4 = inlined_call_operand.vmem [shape: f32[16,1], index: 4, kind: input, shape index: {}]
  %s5 = inlined_call_operand.vmem [shape: f32[128,32], index: 5, kind: input, shape index: {}]
  %s6 = inlined_call_operand.vmem [shape: f32[128,1], index: 6, kind: input, shape index: {}]
  %s7 = inlined_call_operand.hbm [shape: f32[2,32,128], index: 7, kind: output, shape index: {}]
  %s8 = sld [smem:[#allocation0]]
  $region61: #{tpu_custom_call.1} parent=0
    _
  %s10 = ssub.s32 1, %s8
  %s11 = scalar_select 0, %s10, %s8
  $region1: #{tpu_custom_call.1} parent=0
    #allocation2 [shape = 'u8[32768]{0}', space=vmem, size = 0x8000, scoped, tag = 'output window, operand 0']
    #allocation3 [shape = 's32[2]{0}', space=sflag, size = 0x8, scoped, tag = 'scoped memory for tpu_custom_call.1']
    %12 = vsyncpa [#allocation3], 0
    %s13 = scalar_lea.sflag [#allocation3], 1
    %14 = vsyncpa %s13, 0
    loop: start=0, step=1, limit=4
    $region2: #{tpu_custom_call.1} parent=1 // loop_pre_header
      _
    $region3: #{tpu_custom_call.1} parent=1 // loop_header
      %s16 = sphi 0, %s20
      %p17 = scmp.ge.s32.totalorder %s16, 4
      %s26 = sphi 0, %s28
      %s29 = sphi 0, %s26
      %s30 = sphi 0, %s29
      %s46 = sphi 0, %s30
      %s50 = sphi 0, %s50
      %s52 = sphi 0, %s50
      %s53 = sphi 0, %s52
      %s67 = sphi 0, %s53
      %s71 = sphi 0, %s71
      %s73 = sphi 0, %s71
      %s74 = sphi 0, %s73
      %s88 = sphi 0, %s74
      %s92 = sphi 0, %s92
      %s94 = sphi 0, %s92
      %s95 = sphi 0, %s94
      %s109 = sphi 0, %s95
      %s113 = sphi 0, %s113
      %s115 = sphi 0, %s113
      %s116 = sphi 0, %s115
      %s130 = sphi 0, %s116
      %s134 = sphi 0, %s134
      %s136 = sphi 0, %s134
      %s137 = sphi 0, %s136
      %s151 = sphi 0, %s137
      %s155 = sphi 0, %s155
      %s157 = sphi 0, %s155
      %s158 = sphi 0, %s157
      %s172 = sphi 0, %s158
      %s178 = sphi 0, %s180
      %s181 = sphi 0, %s178
      %s182 = sphi 0, %s181
      %s198 = sphi 0, %s182
    $region4: #{tpu_custom_call.1} parent=1 // loop_header_branch
      %19 = sbr.rel (%p17) target = $region8
    $region5: #{tpu_custom_call.1} parent=1 // loop_body
      %s21 = ssub.s32 %s16, 1
      %s22 = ssub.s32 %s16, 2
      %s23 = sadd.s32 %s16, 1
      %s24 = ssub.s32 %s16, %s23
      %p25 = scmp.eq.s32.totalorder %s24, 0
      %s27 = sadd.s32 %s26, 1
      %s28 = scalar_select %p25, %s26, %s27
      %p31 = pneg %p25
      %p32 = scmp.eq.s32.totalorder %s16, 1
      %p33 = por %p31, %p32
      %p34 = scmp.ne.s32.totalorder %s26, %s29
      %p35 = scmp.eq.s32.totalorder %s16, 0
      %p36 = por %p34, %p35
      %p37 = scmp.ne.s32.totalorder %s26, %s29
      %p38 = scmp.eq.s32.totalorder %s21, 1
      %p39 = por %p37, %p38
      %p40 = scmp.ne.s32.totalorder %s29, %s30
      %p41 = scmp.eq.s32.totalorder %s21, 0
      %p42 = por %p40, %p41
      %p43 = scmp.ne.s32.totalorder %s29, %s30
      %p44 = scmp.eq.s32.totalorder %s22, 1
      %p45 = por %p43, %p44
      %p47 = scmp.ne.s32.totalorder %s30, %s46
      %p48 = scmp.eq.s32.totalorder %s22, 0
      %p49 = por %p47, %p48
      %s51 = sadd.s32 %s50, 1
      %p54 = scmp.eq.s32.totalorder %s16, 1
      %p55 = scmp.ne.s32.totalorder %s50, %s52
      %p56 = scmp.eq.s32.totalorder %s16, 0
      %p57 = por %p55, %p56
      %p58 = scmp.ne.s32.totalorder %s50, %s52
      %p59 = scmp.eq.s32.totalorder %s21, 1
      %p60 = por %p58, %p59
      %p61 = scmp.ne.s32.totalorder %s52, %s53
      %p62 = scmp.eq.s32.totalorder %s21, 0
      %p63 = por %p61, %p62
      %p64 = scmp.ne.s32.totalorder %s52, %s53
      %p65 = scmp.eq.s32.totalorder %s22, 1
      %p66 = por %p64, %p65
      %p68 = scmp.ne.s32.totalorder %s53, %s67
      %p69 = scmp.eq.s32.totalorder %s22, 0
      %p70 = por %p68, %p69
      %s72 = sadd.s32 %s71, 1
      %p75 = scmp.eq.s32.totalorder %s16, 1
      %p76 = scmp.ne.s32.totalorder %s71, %s73
      %p77 = scmp.eq.s32.totalorder %s16, 0
      %p78 = por %p76, %p77
      %p79 = scmp.ne.s32.totalorder %s71, %s73
      %p80 = scmp.eq.s32.totalorder %s21, 1
      %p81 = por %p79, %p80
      %p82 = scmp.ne.s32.totalorder %s73, %s74
      %p83 = scmp.eq.s32.totalorder %s21, 0
      %p84 = por %p82, %p83
      %p85 = scmp.ne.s32.totalorder %s73, %s74
      %p86 = scmp.eq.s32.totalorder %s22, 1
      %p87 = por %p85, %p86
      %p89 = scmp.ne.s32.totalorder %s74, %s88
      %p90 = scmp.eq.s32.totalorder %s22, 0
      %p91 = por %p89, %p90
      %s93 = sadd.s32 %s92, 1
      %p96 = scmp.eq.s32.totalorder %s16, 1
      %p97 = scmp.ne.s32.totalorder %s92, %s94
      %p98 = scmp.eq.s32.totalorder %s16, 0
      %p99 = por %p97, %p98
      %p100 = scmp.ne.s32.totalorder %s92, %s94
      %p101 = scmp.eq.s32.totalorder %s21, 1
      %p102 = por %p100, %p101
      %p103 = scmp.ne.s32.totalorder %s94, %s95
      %p104 = scmp.eq.s32.totalorder %s21, 0
      %p105 = por %p103, %p104
      %p106 = scmp.ne.s32.totalorder %s94, %s95
      %p107 = scmp.eq.s32.totalorder %s22, 1
      %p108 = por %p106, %p107
      %p110 = scmp.ne.s32.totalorder %s95, %s109
      %p111 = scmp.eq.s32.totalorder %s22, 0
      %p112 = por %p110, %p111
      %s114 = sadd.s32 %s113, 1
      %p117 = scmp.eq.s32.totalorder %s16, 1
      %p118 = scmp.ne.s32.totalorder %s113, %s115
      %p119 = scmp.eq.s32.totalorder %s16, 0
      %p120 = por %p118, %p119
      %p121 = scmp.ne.s32.totalorder %s113, %s115
      %p122 = scmp.eq.s32.totalorder %s21, 1
      %p123 = por %p121, %p122
      %p124 = scmp.ne.s32.totalorder %s115, %s116
      %p125 = scmp.eq.s32.totalorder %s21, 0
      %p126 = por %p124, %p125
      %p127 = scmp.ne.s32.totalorder %s115, %s116
      %p128 = scmp.eq.s32.totalorder %s22, 1
      %p129 = por %p127, %p128
      %p131 = scmp.ne.s32.totalorder %s116, %s130
      %p132 = scmp.eq.s32.totalorder %s22, 0
      %p133 = por %p131, %p132
      %s135 = sadd.s32 %s134, 1
      %p138 = scmp.eq.s32.totalorder %s16, 1
      %p139 = scmp.ne.s32.totalorder %s134, %s136
      %p140 = scmp.eq.s32.totalorder %s16, 0
      %p141 = por %p139, %p140
      %p142 = scmp.ne.s32.totalorder %s134, %s136
      %p143 = scmp.eq.s32.totalorder %s21, 1
      %p144 = por %p142, %p143
      %p145 = scmp.ne.s32.totalorder %s136, %s137
      %p146 = scmp.eq.s32.totalorder %s21, 0
      %p147 = por %p145, %p146
      %p148 = scmp.ne.s32.totalorder %s136, %s137
      %p149 = scmp.eq.s32.totalorder %s22, 1
      %p150 = por %p148, %p149
      %p152 = scmp.ne.s32.totalorder %s137, %s151
      %p153 = scmp.eq.s32.totalorder %s22, 0
      %p154 = por %p152, %p153
      %s156 = sadd.s32 %s155, 1
      %p159 = scmp.eq.s32.totalorder %s16, 1
      %p160 = scmp.ne.s32.totalorder %s155, %s157
      %p161 = scmp.eq.s32.totalorder %s16, 0
      %p162 = por %p160, %p161
      %p163 = scmp.ne.s32.totalorder %s155, %s157
      %p164 = scmp.eq.s32.totalorder %s21, 1
      %p165 = por %p163, %p164
      %p166 = scmp.ne.s32.totalorder %s157, %s158
      %p167 = scmp.eq.s32.totalorder %s21, 0
      %p168 = por %p166, %p167
      %p169 = scmp.ne.s32.totalorder %s157, %s158
      %p170 = scmp.eq.s32.totalorder %s22, 1
      %p171 = por %p169, %p170
      %p173 = scmp.ne.s32.totalorder %s158, %s172
      %p174 = scmp.eq.s32.totalorder %s22, 0
      %p175 = por %p173, %p174
      %s176 = ssub.s32 %s16, %s23
      %p177 = scmp.eq.s32.totalorder %s176, 0
      %s179 = sadd.s32 %s178, 1
      %s180 = scalar_select %p177, %s178, %s179
      %p183 = pneg %p177
      %p184 = scmp.eq.s32.totalorder %s16, 1
      %p185 = por %p183, %p184
      %p186 = scmp.ne.s32.totalorder %s178, %s181
      %p187 = scmp.eq.s32.totalorder %s16, 0
      %p188 = por %p186, %p187
      %p189 = scmp.ne.s32.totalorder %s178, %s181
      %p190 = scmp.eq.s32.totalorder %s21, 1
      %p191 = por %p189, %p190
      %p192 = scmp.ne.s32.totalorder %s181, %s182
      %p193 = scmp.eq.s32.totalorder %s21, 0
      %p194 = por %p192, %p193
      %p195 = scmp.ne.s32.totalorder %s181, %s182
      %p196 = scmp.eq.s32.totalorder %s22, 1
      %p197 = por %p195, %p196
      %p199 = scmp.ne.s32.totalorder %s182, %s198
      %p200 = scmp.eq.s32.totalorder %s22, 0
      %p201 = por %p199, %p200
      %p202 = scmp.le.s32.totalorder 1, %s16
      %p203 = scmp.lt.s32.totalorder %s16, 3
      %p204 = pnand %p202, %p203
      %p205 = pneg %p204
      // Predicated region
      $region9: #{tpu_custom_call.1} parent=5 // pred_check
        _
      $region10: #{tpu_custom_call.1} parent=5 // pred_check_branch
        %207 = sbr.rel (%p204) target = $region12
      $region11: #{tpu_custom_call.1} parent=5 // pred_region
        %s208 = ssub.s32 %s16, 1
        // Predicated region
        $region13: #{tpu_custom_call.1} parent=11 // pred_check
          %p209 = pneg %p63
        $region14: #{tpu_custom_call.1} parent=11 // pred_check_branch
          %211 = sbr.rel (%p209) target = $region16
        $region15: #{tpu_custom_call.1} parent=11 // pred_region
          _
        $region16: #{tpu_custom_call.1} parent=11 // pred_fallthru
          _
        // Predicated region
        $region17: #{tpu_custom_call.1} parent=11 // pred_check
          %p212 = pneg %p84
        $region18: #{tpu_custom_call.1} parent=11 // pred_check_branch
          %214 = sbr.rel (%p212) target = $region20
        $region19: #{tpu_custom_call.1} parent=11 // pred_region
          _
        $region20: #{tpu_custom_call.1} parent=11 // pred_fallthru
          _
        // Predicated region
        $region21: #{tpu_custom_call.1} parent=11 // pred_check
          %p215 = pneg %p105
        $region22: #{tpu_custom_call.1} parent=11 // pred_check_branch
          %217 = sbr.rel (%p215) target = $region24
        $region23: #{tpu_custom_call.1} parent=11 // pred_region
          _
        $region24: #{tpu_custom_call.1} parent=11 // pred_fallthru
          _
        // Predicated region
        $region25: #{tpu_custom_call.1} parent=11 // pred_check
          %p218 = pneg %p126
        $region26: #{tpu_custom_call.1} parent=11 // pred_check_branch
          %220 = sbr.rel (%p218) target = $region28
        $region27: #{tpu_custom_call.1} parent=11 // pred_region
          _
        $region28: #{tpu_custom_call.1} parent=11 // pred_fallthru
          _
        // Predicated region
        $region29: #{tpu_custom_call.1} parent=11 // pred_check
          %p221 = pneg %p147
        $region30: #{tpu_custom_call.1} parent=11 // pred_check_branch
          %223 = sbr.rel (%p221) target = $region32
        $region31: #{tpu_custom_call.1} parent=11 // pred_region
          _
        $region32: #{tpu_custom_call.1} parent=11 // pred_fallthru
          _
        // Predicated region
        $region33: #{tpu_custom_call.1} parent=11 // pred_check
          %p224 = pneg %p168
        $region34: #{tpu_custom_call.1} parent=11 // pred_check_branch
          %226 = sbr.rel (%p224) target = $region36
        $region35: #{tpu_custom_call.1} parent=11 // pred_region
          _
        $region36: #{tpu_custom_call.1} parent=11 // pred_fallthru
          _
      $region12: #{tpu_custom_call.1} parent=5 // pred_fallthru
        _
      %p227 = scmp.lt.s32.totalorder %s16, 2
      // Predicated region
      $region37: #{tpu_custom_call.1} parent=5 // pred_check
        %p228 = pneg %p227
      $region38: #{tpu_custom_call.1} parent=5 // pred_check_branch
        %230 = sbr.rel (%p228) target = $region40
      $region39: #{tpu_custom_call.1} parent=5 // pred_region
        // Predicated region
        $region41: #{tpu_custom_call.1} parent=39 // pred_check
          %p231 = pneg %p36
        $region42: #{tpu_custom_call.1} parent=39 // pred_check_branch
          %233 = sbr.rel (%p231) target = $region44
        $region43: #{tpu_custom_call.1} parent=39 // pred_region
          %p234 = scmp.lt.s32.totalorder %s16, 1
          %s235 = scalar_select %p234, %s16, 1
          %s236 = smul.addr %s235, 4
          %s237 = smul.addr %s236, 8
          %s238 = scalar_lea.vmem %s0, %s237
        $region44: #{tpu_custom_call.1} parent=39 // pred_fallthru
          _
      $region40: #{tpu_custom_call.1} parent=5 // pred_fallthru
        _
      %p239 = scmp.le.s32.totalorder 1, %s16
      %p240 = scmp.lt.s32.totalorder %s16, 3
      %p241 = pnand %p239, %p240
      %p242 = pneg %p241
      // Predicated region
      $region45: #{tpu_custom_call.1} parent=5 // pred_check
        _
      $region46: #{tpu_custom_call.1} parent=5 // pred_check_branch
        %244 = sbr.rel (%p241) target = $region48
      $region47: #{tpu_custom_call.1} parent=5 // pred_region
        %s245 = ssub.s32 %s16, 1
        %p246 = scmp.lt.s32.totalorder %s21, 1
        %s247 = scalar_select %p246, %s21, 1
        %s248 = smul.addr %s247, 4
        %s249 = smul.addr %s248, 8
        %s250 = scalar_lea.vmem %s0, %s249
        %p251 = pneg %p42
        %p252 = pneg %p39
        %p253 = pneg %p63
        %p254 = pneg %p60
        %p255 = pneg %p84
        %p256 = pneg %p81
        %p257 = pneg %p105
        %p258 = pneg %p102
        %p259 = pneg %p126
        %p260 = pneg %p123
        %p261 = pneg %p147
        %p262 = pneg %p144
        %p263 = pneg %p168
        %p264 = pneg %p165
        %p265 = pneg %p194
        %p266 = pneg %p191
        %s267 = sand.u32 %s181, 1
        %s268 = scalar_lea.sflag [#allocation3], %s267
        %s269 = sand.u32 %s181, 1
        %s270 = smul.addr %s269, 32
        %s271 = scalar_lea.vmem [#allocation2], %s270
        %p272 = scmp.lt.s32.totalorder %s21, 1
        %s273 = scalar_select %p272, %s21, 1
        %s274 = smul.addr %s273, 4
        %s275 = smul.addr %s274, 8
        %s276 = scalar_lea.vmem %s0, %s275
        %v278 = vld [vmem:[%s276] sm:$0xff]
        %v279 = vld [vmem:[%s276 + $0x8] sm:$0xff]
        %v280 = vld [vmem:[%s276 + $0x10] sm:$0xff]
        %v281 = vld [vmem:[%s276 + $0x18] sm:$0xff]
        %v282 = vpack.c.bf16 %v279, %v278
        %v283 = vpack.c.bf16 %v281, %v280
        %v284 = vld [vmem:[%s1] sm:$0xff]
        %v285 = vld [vmem:[%s1 + $0x8] sm:$0xff]
        %v286 = vpack.c.bf16 %v285, %v284
        %v287 = vld [vmem:[%s2] sm:$0xff]
        %v288 = vld [vmem:[%s2 + $0x8] sm:$0xff]
        %290 = vset.pattern.permute.xlu0 0
        %291 = vperm.xlu0 %290, %v287
        %v292 = vpop.permute.xlu0 %291
        %295 = vset.pattern.permute.xlu0 0
        %296 = vperm.xlu0 %295, %v288
        %v297 = vpop.permute.xlu0 %296
        %vm299 = vcmask 261120
        %v301 = vsel %vm299, %v286, 0
        %303 = vmatprep.subr.bf16.mxu0 0
        %304 = vmatpush1.bf16.msra.mxu0 %v282
        %305 = vmatprep.subr.bf16.mxu0 0
        %306 = vmatpush1.bf16.msra.mxu0 %v283
        %307 = vmatprep.subr.bf16.mxu0 0
        %308 = vmatpush1.bf16.msra.mxu0 0
        %309 = vmatprep.subr.bf16.mxu0 0
        %310 = vmatpush1.bf16.msra.mxu0 0
        %311 = vmatprep.subr.bf16.mxu0 0
        %312 = vmatpush1.bf16.msra.mxu0 0
        %313 = vmatprep.subr.bf16.mxu0 0
        %314 = vmatpush1.bf16.msra.mxu0 0
        %315 = vmatprep.subr.bf16.mxu0 0
        %316 = vmatpush1.bf16.msra.mxu0 0
        %317 = vmatprep.subr.bf16.mxu0 0
        %318 = vmatpush1.bf16.msra.mxu0 0
        %319 = vmatprep.subr.bf16.mxu0 0
        %320 = vmatpush1.bf16.msra.mxu0 0
        %321 = vmatprep.subr.bf16.mxu0 0
        %322 = vmatpush1.bf16.msra.mxu0 0
        %323 = vmatprep.subr.bf16.mxu0 0
        %324 = vmatpush1.bf16.msra.mxu0 0
        %325 = vmatprep.subr.bf16.mxu0 0
        %326 = vmatpush1.bf16.msra.mxu0 0
        %327 = vmatprep.subr.bf16.mxu0 0
        %328 = vmatpush1.bf16.msra.mxu0 0
        %329 = vmatprep.subr.bf16.mxu0 0
        %330 = vmatpush1.bf16.msra.mxu0 0
        %331 = vmatprep.subr.bf16.mxu0 0
        %332 = vmatpush1.bf16.msra.mxu0 0
        %333 = vmatprep.subr.bf16.mxu0 0
        %334 = vmatpush1.bf16.msra.mxu0 0
        %335 = vmatprep.mubr.bf16.mxu0 0
        %336 = vmatmul.mubr.bf16.gmra.mrb[0].mxu0 %v301
        %v337 = vpop.f32.mrb[0].mxu0
        %v338 = vadd.f32 %v292, %v337
        %v339 = vpop.f32.mrb[0].mxu0
        %v340 = vpop.f32.mrb[0].mxu0
        %v341 = vadd.f32 %v297, %v340
        %v342 = vpop.f32.mrb[0].mxu0
        %343 = vdwg.mxu0
        %v344 = vld [vmem:[%s3] sm:$0xff]
        %v345 = vld [vmem:[%s3 + $0x8] sm:$0xff]
        %v346 = vpack.c.bf16 %v345, %v344
        %v347 = vld [vmem:[%s4] sm:$0xff]
        %v348 = vld [vmem:[%s4 + $0x8] sm:$0xff]
        %350 = vset.pattern.permute.xlu0 0
        %351 = vperm.xlu0 %350, %v347
        %v352 = vpop.permute.xlu0 %351
        %355 = vset.pattern.permute.xlu0 0
        %356 = vperm.xlu0 %355, %v348
        %v357 = vpop.permute.xlu0 %356
        %v360 = vsel %vm299, %v346, 0
        %362 = vmatprep.subr.bf16.mxu0 0
        %363 = vmatpush1.bf16.msra.mxu0 %v282
        %364 = vmatprep.subr.bf16.mxu0 0
        %365 = vmatpush1.bf16.msra.mxu0 %v283
        %366 = vmatprep.subr.bf16.mxu0 0
        %367 = vmatpush1.bf16.msra.mxu0 0
        %368 = vmatprep.subr.bf16.mxu0 0
        %369 = vmatpush1.bf16.msra.mxu0 0
        %370 = vmatprep.subr.bf16.mxu0 0
        %371 = vmatpush1.bf16.msra.mxu0 0
        %372 = vmatprep.subr.bf16.mxu0 0
        %373 = vmatpush1.bf16.msra.mxu0 0
        %374 = vmatprep.subr.bf16.mxu0 0
        %375 = vmatpush1.bf16.msra.mxu0 0
        %376 = vmatprep.subr.bf16.mxu0 0
        %377 = vmatpush1.bf16.msra.mxu0 0
        %378 = vmatprep.subr.bf16.mxu0 0
        %379 = vmatpush1.bf16.msra.mxu0 0
        %380 = vmatprep.subr.bf16.mxu0 0
        %381 = vmatpush1.bf16.msra.mxu0 0
        %382 = vmatprep.subr.bf16.mxu0 0
        %383 = vmatpush1.bf16.msra.mxu0 0
        %384 = vmatprep.subr.bf16.mxu0 0
        %385 = vmatpush1.bf16.msra.mxu0 0
        %386 = vmatprep.subr.bf16.mxu0 0
        %387 = vmatpush1.bf16.msra.mxu0 0
        %388 = vmatprep.subr.bf16.mxu0 0
        %389 = vmatpush1.bf16.msra.mxu0 0
        %390 = vmatprep.subr.bf16.mxu0 0
        %391 = vmatpush1.bf16.msra.mxu0 0
        %392 = vmatprep.subr.bf16.mxu0 0
        %393 = vmatpush1.bf16.msra.mxu0 0
        %394 = vmatprep.mubr.bf16.mxu0 0
        %395 = vmatmul.mubr.bf16.gmra.mrb[0].mxu0 %v360
        %v396 = vpop.f32.mrb[0].mxu0
        %v397 = vadd.f32 %v352, %v396
        %v398 = vpop.f32.mrb[0].mxu0
        %v399 = vpop.f32.mrb[0].mxu0
        %v400 = vadd.f32 %v357, %v399
        %v401 = vpop.f32.mrb[0].mxu0
        %402 = vdwg.mxu0
        %v403 = vld [vmem:[%s5] sm:$0xff]
        %v404 = vld [vmem:[%s5 + $0x8] sm:$0xff]
        %v405 = vld [vmem:[%s5 + $0x10] sm:$0xff]
        %v406 = vld [vmem:[%s5 + $0x18] sm:$0xff]
        %v407 = vld [vmem:[%s5 + $0x20] sm:$0xff]
        %v408 = vld [vmem:[%s5 + $0x28] sm:$0xff]
        %v409 = vld [vmem:[%s5 + $0x30] sm:$0xff]
        %v410 = vld [vmem:[%s5 + $0x38] sm:$0xff]
        %v411 = vld [vmem:[%s5 + $0x40] sm:$0xff]
        %v412 = vld [vmem:[%s5 + $0x48] sm:$0xff]
        %v413 = vld [vmem:[%s5 + $0x50] sm:$0xff]
        %v414 = vld [vmem:[%s5 + $0x58] sm:$0xff]
        %v415 = vld [vmem:[%s5 + $0x60] sm:$0xff]
        %v416 = vld [vmem:[%s5 + $0x68] sm:$0xff]
        %v417 = vld [vmem:[%s5 + $0x70] sm:$0xff]
        %v418 = vld [vmem:[%s5 + $0x78] sm:$0xff]
        %v419 = vpack.c.bf16 %v404, %v403
        %v420 = vpack.c.bf16 %v406, %v405
        %v421 = vpack.c.bf16 %v408, %v407
        %v422 = vpack.c.bf16 %v410, %v409
        %v423 = vpack.c.bf16 %v412, %v411
        %v424 = vpack.c.bf16 %v414, %v413
        %v425 = vpack.c.bf16 %v416, %v415
        %v426 = vpack.c.bf16 %v418, %v417
        %v427 = vld [vmem:[%s6] sm:$0xff]
        %v428 = vld [vmem:[%s6 + $0x8] sm:$0xff]
        %v429 = vld [vmem:[%s6 + $0x10] sm:$0xff]
        %v430 = vld [vmem:[%s6 + $0x18] sm:$0xff]
        %v431 = vld [vmem:[%s6 + $0x20] sm:$0xff]
        %v432 = vld [vmem:[%s6 + $0x28] sm:$0xff]
        %v433 = vld [vmem:[%s6 + $0x30] sm:$0xff]
        %v434 = vld [vmem:[%s6 + $0x38] sm:$0xff]
        %v435 = vld [vmem:[%s6 + $0x40] sm:$0xff]
        %v436 = vld [vmem:[%s6 + $0x48] sm:$0xff]
        %v437 = vld [vmem:[%s6 + $0x50] sm:$0xff]
        %v438 = vld [vmem:[%s6 + $0x58] sm:$0xff]
        %v439 = vld [vmem:[%s6 + $0x60] sm:$0xff]
        %v440 = vld [vmem:[%s6 + $0x68] sm:$0xff]
        %v441 = vld [vmem:[%s6 + $0x70] sm:$0xff]
        %v442 = vld [vmem:[%s6 + $0x78] sm:$0xff]
        %444 = vset.pattern.permute.xlu0 0
        %445 = vperm.xlu0 %444, %v427
        %v446 = vpop.permute.xlu0 %445
        %449 = vset.pattern.permute.xlu0 0
        %450 = vperm.xlu0 %449, %v428
        %v451 = vpop.permute.xlu0 %450
        %454 = vset.pattern.permute.xlu0 0
        %455 = vperm.xlu0 %454, %v429
        %v456 = vpop.permute.xlu0 %455
        %459 = vset.pattern.permute.xlu0 0
        %460 = vperm.xlu0 %459, %v430
        %v461 = vpop.permute.xlu0 %460
        %464 = vset.pattern.permute.xlu0 0
        %465 = vperm.xlu0 %464, %v431
        %v466 = vpop.permute.xlu0 %465
        %469 = vset.pattern.permute.xlu0 0
        %470 = vperm.xlu0 %469, %v432
        %v471 = vpop.permute.xlu0 %470
        %474 = vset.pattern.permute.xlu0 0
        %475 = vperm.xlu0 %474, %v433
        %v476 = vpop.permute.xlu0 %475
        %479 = vset.pattern.permute.xlu0 0
        %480 = vperm.xlu0 %479, %v434
        %v481 = vpop.permute.xlu0 %480
        %484 = vset.pattern.permute.xlu0 0
        %485 = vperm.xlu0 %484, %v435
        %v486 = vpop.permute.xlu0 %485
        %489 = vset.pattern.permute.xlu0 0
        %490 = vperm.xlu0 %489, %v436
        %v491 = vpop.permute.xlu0 %490
        %494 = vset.pattern.permute.xlu0 0
        %495 = vperm.xlu0 %494, %v437
        %v496 = vpop.permute.xlu0 %495
        %499 = vset.pattern.permute.xlu0 0
        %500 = vperm.xlu0 %499, %v438
        %v501 = vpop.permute.xlu0 %500
        %504 = vset.pattern.permute.xlu0 0
        %505 = vperm.xlu0 %504, %v439
        %v506 = vpop.permute.xlu0 %505
        %509 = vset.pattern.permute.xlu0 0
        %510 = vperm.xlu0 %509, %v440
        %v511 = vpop.permute.xlu0 %510
        %514 = vset.pattern.permute.xlu0 0
        %515 = vperm.xlu0 %514, %v441
        %v516 = vpop.permute.xlu0 %515
        %519 = vset.pattern.permute.xlu0 0
        %520 = vperm.xlu0 %519, %v442
        %v521 = vpop.permute.xlu0 %520
        %v524 = vsel %vm299, %v419, 0
        %v527 = vsel %vm299, %v420, 0
        %v530 = vsel %vm299, %v421, 0
        %v533 = vsel %vm299, %v422, 0
        %v536 = vsel %vm299, %v423, 0
        %v539 = vsel %vm299, %v424, 0
        %v542 = vsel %vm299, %v425, 0
        %v545 = vsel %vm299, %v426, 0
        %547 = vmatprep.subr.bf16.mxu0 0
        %548 = vmatpush1.bf16.msra.mxu0 %v282
        %549 = vmatprep.subr.bf16.mxu0 0
        %550 = vmatpush1.bf16.msra.mxu0 %v283
        %551 = vmatprep.subr.bf16.mxu0 0
        %552 = vmatpush1.bf16.msra.mxu0 0
        %553 = vmatprep.subr.bf16.mxu0 0
        %554 = vmatpush1.bf16.msra.mxu0 0
        %555 = vmatprep.subr.bf16.mxu0 0
        %556 = vmatpush1.bf16.msra.mxu0 0
        %557 = vmatprep.subr.bf16.mxu0 0
        %558 = vmatpush1.bf16.msra.mxu0 0
        %559 = vmatprep.subr.bf16.mxu0 0
        %560 = vmatpush1.bf16.msra.mxu0 0
        %561 = vmatprep.subr.bf16.mxu0 0
        %562 = vmatpush1.bf16.msra.mxu0 0
        %563 = vmatprep.subr.bf16.mxu0 0
        %564 = vmatpush1.bf16.msra.mxu0 0
        %565 = vmatprep.subr.bf16.mxu0 0
        %566 = vmatpush1.bf16.msra.mxu0 0
        %567 = vmatprep.subr.bf16.mxu0 0
        %568 = vmatpush1.bf16.msra.mxu0 0
        %569 = vmatprep.subr.bf16.mxu0 0
        %570 = vmatpush1.bf16.msra.mxu0 0
        %571 = vmatprep.subr.bf16.mxu0 0
        %572 = vmatpush1.bf16.msra.mxu0 0
        %573 = vmatprep.subr.bf16.mxu0 0
        %574 = vmatpush1.bf16.msra.mxu0 0
        %575 = vmatprep.subr.bf16.mxu0 0
        %576 = vmatpush1.bf16.msra.mxu0 0
        %577 = vmatprep.subr.bf16.mxu0 0
        %578 = vmatpush1.bf16.msra.mxu0 0
        %579 = vmatprep.mubr.bf16.mxu0 0
        %580 = vmatmul.mubr.bf16.gmra.mrb[0].mxu0 %v524
        %v581 = vpop.f32.mrb[0].mxu0
        %v582 = vadd.f32 %v446, %v581
        %v583 = vpop.f32.mrb[0].mxu0
        %v584 = vpop.f32.mrb[0].mxu0
        %v585 = vadd.f32 %v451, %v584
        %v586 = vpop.f32.mrb[0].mxu0
        %587 = vmatprep.mubr.bf16.mxu0 0
        %588 = vmatmul.mubr.bf16.gmra.mrb[0].mxu0 %v527
        %v589 = vpop.f32.mrb[0].mxu0
        %v590 = vadd.f32 %v456, %v589
        %v591 = vpop.f32.mrb[0].mxu0
        %v592 = vpop.f32.mrb[0].mxu0
        %v593 = vadd.f32 %v461, %v592
        %v594 = vpop.f32.mrb[0].mxu0
        %595 = vmatprep.mubr.bf16.mxu0 0
        %596 = vmatmul.mubr.bf16.gmra.mrb[0].mxu0 %v530
        %v597 = vpop.f32.mrb[0].mxu0
        %v598 = vadd.f32 %v466, %v597
        %v599 = vpop.f32.mrb[0].mxu0
        %v600 = vpop.f32.mrb[0].mxu0
        %v601 = vadd.f32 %v471, %v600
        %v602 = vpop.f32.mrb[0].mxu0
        %603 = vmatprep.mubr.bf16.mxu0 0
        %604 = vmatmul.mubr.bf16.gmra.mrb[0].mxu0 %v533
        %v605 = vpop.f32.mrb[0].mxu0
        %v606 = vadd.f32 %v476, %v605
        %v607 = vpop.f32.mrb[0].mxu0
        %v608 = vpop.f32.mrb[0].mxu0
        %v609 = vadd.f32 %v481, %v608
        %v610 = vpop.f32.mrb[0].mxu0
        %611 = vmatprep.mubr.bf16.mxu0 0
        %612 = vmatmul.mubr.bf16.gmra.mrb[0].mxu0 %v536
        %v613 = vpop.f32.mrb[0].mxu0
        %v614 = vadd.f32 %v486, %v613
        %v615 = vpop.f32.mrb[0].mxu0
        %v616 = vpop.f32.mrb[0].mxu0
        %v617 = vadd.f32 %v491, %v616
        %v618 = vpop.f32.mrb[0].mxu0
        %619 = vmatprep.mubr.bf16.mxu0 0
        %620 = vmatmul.mubr.bf16.gmra.mrb[0].mxu0 %v539
        %v621 = vpop.f32.mrb[0].mxu0
        %v622 = vadd.f32 %v496, %v621
        %v623 = vpop.f32.mrb[0].mxu0
        %v624 = vpop.f32.mrb[0].mxu0
        %v625 = vadd.f32 %v501, %v624
        %v626 = vpop.f32.mrb[0].mxu0
        %627 = vmatprep.mubr.bf16.mxu0 0
        %628 = vmatmul.mubr.bf16.gmra.mrb[0].mxu0 %v542
        %v629 = vpop.f32.mrb[0].mxu0
        %v630 = vadd.f32 %v506, %v629
        %v631 = vpop.f32.mrb[0].mxu0
        %v632 = vpop.f32.mrb[0].mxu0
        %v633 = vadd.f32 %v511, %v632
        %v634 = vpop.f32.mrb[0].mxu0
        %635 = vmatprep.mubr.bf16.mxu0 0
        %636 = vmatmul.mubr.bf16.gmra.mrb[0].mxu0 %v545
        %v637 = vpop.f32.mrb[0].mxu0
        %v638 = vadd.f32 %v516, %v637
        %v639 = vpop.f32.mrb[0].mxu0
        %v640 = vpop.f32.mrb[0].mxu0
        %v641 = vadd.f32 %v521, %v640
        %v642 = vpop.f32.mrb[0].mxu0
        %643 = vdwg.mxu0
        %v644 = vmul.f32 %v338, 0.5
        %v645 = vmul.f32 %v341, 0.5
        %v648 = vcombine.high %v644, %v644
        %v649 = vcombine.high %v645, %v645
        %v652 = vpack.c.bf16 %v644, %v644
        %v653 = vpack.c.bf16 %v648, %v648
        %v654 = vpack.c.bf16 %v645, %v645
        %v655 = vpack.c.bf16 %v649, %v649
        %v658 = vcombine.high %v397, %v397
        %v659 = vcombine.high %v400, %v400
        %v662 = vpack.c.bf16 %v397, %v397
        %v663 = vpack.c.bf16 %v658, %v658
        %v664 = vpack.c.bf16 %v400, %v400
        %v665 = vpack.c.bf16 %v659, %v659
        %v666 = vpack.c.bf16 %v585, %v582
        %v667 = vpack.c.bf16 %v593, %v590
        %v668 = vpack.c.bf16 %v601, %v598
        %v669 = vpack.c.bf16 %v609, %v606
        %v670 = vpack.c.bf16 %v617, %v614
        %v671 = vpack.c.bf16 %v625, %v622
        %v672 = vpack.c.bf16 %v633, %v630
        %v673 = vpack.c.bf16 %v641, %v638
        %674 = vxpose.xlu0.c.b16.start [1/8] %v652, 128
        %675 = vxpose.xlu0.c.b16.cont [2/8] 0, 128
        %676 = vxpose.xlu0.c.b16.cont [3/8] 0, 128
        %677 = vxpose.xlu0.c.b16.cont [4/8] 0, 128
        %678 = vxpose.xlu0.c.b16.cont [5/8] 0, 128
        %679 = vxpose.xlu0.c.b16.cont [6/8] 0, 128
        %680 = vxpose.xlu0.c.b16.cont [7/8] 0, 128
        %681 = vxpose.xlu0.c.b16.end [8/8] 0, 128
        %v682 = vpop.trf.xlu0
        %v683 = vpop.trf.xlu0
        %v684 = vpop.trf.xlu0
        %v685 = vpop.trf.xlu0
        %v686 = vpop.trf.xlu0
        %v687 = vpop.trf.xlu0
        %v688 = vpop.trf.xlu0
        %v689 = vpop.trf.xlu0
        %vm690 = vcmask 31744
        %v692 = vsel %vm690, %v682, 0
        %v695 = vsel %vm690, %v683, 0
        %v698 = vsel %vm690, %v684, 0
        %v701 = vsel %vm690, %v685, 0
        %v704 = vsel %vm690, %v686, 0
        %v707 = vsel %vm690, %v687, 0
        %v710 = vsel %vm690, %v688, 0
        %v713 = vsel %vm690, %v689, 0
        %vm715 = vcmask 1041408
        %v717 = vsel %vm715, %v662, 0
        %719 = vmatprep.subr.bf16.mxu0 0
        %720 = vmatpush1.bf16.msra.mxu0 %v717
        %721 = vmatprep.subr.bf16.mxu0 0
        %722 = vmatpush1.bf16.msra.mxu0 0
        %723 = vmatprep.subr.bf16.mxu0 0
        %724 = vmatpush1.bf16.msra.mxu0 0
        %725 = vmatprep.subr.bf16.mxu0 0
        %726 = vmatpush1.bf16.msra.mxu0 0
        %727 = vmatprep.subr.bf16.mxu0 0
        %728 = vmatpush1.bf16.msra.mxu0 0
        %729 = vmatprep.subr.bf16.mxu0 0
        %730 = vmatpush1.bf16.msra.mxu0 0
        %731 = vmatprep.subr.bf16.mxu0 0
        %732 = vmatpush1.bf16.msra.mxu0 0
        %733 = vmatprep.subr.bf16.mxu0 0
        %734 = vmatpush1.bf16.msra.mxu0 0
        %735 = vmatprep.subr.bf16.mxu0 0
        %736 = vmatpush1.bf16.msra.mxu0 0
        %737 = vmatprep.subr.bf16.mxu0 0
        %738 = vmatpush1.bf16.msra.mxu0 0
        %739 = vmatprep.subr.bf16.mxu0 0
        %740 = vmatpush1.bf16.msra.mxu0 0
        %741 = vmatprep.subr.bf16.mxu0 0
        %742 = vmatpush1.bf16.msra.mxu0 0
        %743 = vmatprep.subr.bf16.mxu0 0
        %744 = vmatpush1.bf16.msra.mxu0 0
        %745 = vmatprep.subr.bf16.mxu0 0
        %746 = vmatpush1.bf16.msra.mxu0 0
        %747 = vmatprep.subr.bf16.mxu0 0
        %748 = vmatpush1.bf16.msra.mxu0 0
        %749 = vmatprep.subr.bf16.mxu0 0
        %750 = vmatpush1.bf16.msra.mxu0 0
        %751 = vmatprep.mubr.bf16.mxu0 0
        %752 = vmatmul.mubr.bf16.gmra.mrb[0].mxu0 %v692
        %v753 = vpop.f32.mrb[0].mxu0
        %v754 = vadd.f32 0.0, %v753
        %v755 = vpop.f32.mrb[0].mxu0
        %v756 = vpop.f32.mrb[0].mxu0
        %v757 = vadd.f32 0.0, %v756
        %v758 = vpop.f32.mrb[0].mxu0
        %759 = vmatprep.mubr.bf16.mxu0 0
        %760 = vmatmul.mubr.bf16.gmra.mrb[0].mxu0 %v695
        %v761 = vpop.f32.mrb[0].mxu0
        %v762 = vadd.f32 0.0, %v761
        %v763 = vpop.f32.mrb[0].mxu0
        %v764 = vpop.f32.mrb[0].mxu0
        %v765 = vadd.f32 0.0, %v764
        %v766 = vpop.f32.mrb[0].mxu0
        %767 = vmatprep.mubr.bf16.mxu0 0
        %768 = vmatmul.mubr.bf16.gmra.mrb[0].mxu0 %v698
        %v769 = vpop.f32.mrb[0].mxu0
        %v770 = vadd.f32 0.0, %v769
        %v771 = vpop.f32.mrb[0].mxu0
        %v772 = vpop.f32.mrb[0].mxu0
        %v773 = vadd.f32 0.0, %v772
        %v774 = vpop.f32.mrb[0].mxu0
        %775 = vmatprep.mubr.bf16.mxu0 0
        %776 = vmatmul.mubr.bf16.gmra.mrb[0].mxu0 %v701
        %v777 = vpop.f32.mrb[0].mxu0
        %v778 = vadd.f32 0.0, %v777
        %v779 = vpop.f32.mrb[0].mxu0
        %v780 = vpop.f32.mrb[0].mxu0
        %v781 = vadd.f32 0.0, %v780
        %v782 = vpop.f32.mrb[0].mxu0
        %783 = vmatprep.mubr.bf16.mxu0 0
        %784 = vmatmul.mubr.bf16.gmra.mrb[0].mxu0 %v704
        %v785 = vpop.f32.mrb[0].mxu0
        %v786 = vadd.f32 0.0, %v785
        %v787 = vpop.f32.mrb[0].mxu0
        %v788 = vpop.f32.mrb[0].mxu0
        %v789 = vadd.f32 0.0, %v788
        %v790 = vpop.f32.mrb[0].mxu0
        %791 = vmatprep.mubr.bf16.mxu0 0
        %792 = vmatmul.mubr.bf16.gmra.mrb[0].mxu0 %v707
        %v793 = vpop.f32.mrb[0].mxu0
        %v794 = vadd.f32 0.0, %v793
        %v795 = vpop.f32.mrb[0].mxu0
        %v796 = vpop.f32.mrb[0].mxu0
        %v797 = vadd.f32 0.0, %v796
        %v798 = vpop.f32.mrb[0].mxu0
        %799 = vmatprep.mubr.bf16.mxu0 0
        %800 = vmatmul.mubr.bf16.gmra.mrb[0].mxu0 %v710
        %v801 = vpop.f32.mrb[0].mxu0
        %v802 = vadd.f32 0.0, %v801
        %v803 = vpop.f32.mrb[0].mxu0
        %v804 = vpop.f32.mrb[0].mxu0
        %v805 = vadd.f32 0.0, %v804
        %v806 = vpop.f32.mrb[0].mxu0
        %807 = vmatprep.mubr.bf16.mxu0 0
        %808 = vmatmul.mubr.bf16.gmra.mrb[0].mxu0 %v713
        %v809 = vpop.f32.mrb[0].mxu0
        %v810 = vadd.f32 0.0, %v809
        %v811 = vpop.f32.mrb[0].mxu0
        %v812 = vpop.f32.mrb[0].mxu0
        %v813 = vadd.f32 0.0, %v812
        %v814 = vpop.f32.mrb[0].mxu0
        %815 = vdwg.mxu0
        %816 = vxpose.xlu0.c.b16.start [1/8] %v653, 128
        %817 = vxpose.xlu0.c.b16.cont [2/8] 0, 128
        %818 = vxpose.xlu0.c.b16.cont [3/8] 0, 128
        %819 = vxpose.xlu0.c.b16.cont [4/8] 0, 128
        %820 = vxpose.xlu0.c.b16.cont [5/8] 0, 128
        %821 = vxpose.xlu0.c.b16.cont [6/8] 0, 128
        %822 = vxpose.xlu0.c.b16.cont [7/8] 0, 128
        %823 = vxpose.xlu0.c.b16.end [8/8] 0, 128
        %v824 = vpop.trf.xlu0
        %v825 = vpop.trf.xlu0
        %v826 = vpop.trf.xlu0
        %v827 = vpop.trf.xlu0
        %v828 = vpop.trf.xlu0
        %v829 = vpop.trf.xlu0
        %v830 = vpop.trf.xlu0
        %v831 = vpop.trf.xlu0
        %v833 = vsel %vm690, %v824, 0
        %v836 = vsel %vm690, %v825, 0
        %v839 = vsel %vm690, %v826, 0
        %v842 = vsel %vm690, %v827, 0
        %v845 = vsel %vm690, %v828, 0
        %v848 = vsel %vm690, %v829, 0
        %v851 = vsel %vm690, %v830, 0
        %v854 = vsel %vm690, %v831, 0
        %v857 = vsel %vm715, %v663, 0
        %859 = vmatprep.subr.bf16.mxu0 0
        %860 = vmatpush1.bf16.msra.mxu0 %v857
        %861 = vmatprep.subr.bf16.mxu0 0
        %862 = vmatpush1.bf16.msra.mxu0 0
        %863 = vmatprep.subr.bf16.mxu0 0
        %864 = vmatpush1.bf16.msra.mxu0 0
        %865 = vmatprep.subr.bf16.mxu0 0
        %866 = vmatpush1.bf16.msra.mxu0 0
        %867 = vmatprep.subr.bf16.mxu0 0
        %868 = vmatpush1.bf16.msra.mxu0 0
        %869 = vmatprep.subr.bf16.mxu0 0
        %870 = vmatpush1.bf16.msra.mxu0 0
        %871 = vmatprep.subr.bf16.mxu0 0
        %872 = vmatpush1.bf16.msra.mxu0 0
        %873 = vmatprep.subr.bf16.mxu0 0
        %874 = vmatpush1.bf16.msra.mxu0 0
        %875 = vmatprep.subr.bf16.mxu0 0
        %876 = vmatpush1.bf16.msra.mxu0 0
        %877 = vmatprep.subr.bf16.mxu0 0
        %878 = vmatpush1.bf16.msra.mxu0 0
        %879 = vmatprep.subr.bf16.mxu0 0
        %880 = vmatpush1.bf16.msra.mxu0 0
        %881 = vmatprep.subr.bf16.mxu0 0
        %882 = vmatpush1.bf16.msra.mxu0 0
        %883 = vmatprep.subr.bf16.mxu0 0
        %884 = vmatpush1.bf16.msra.mxu0 0
        %885 = vmatprep.subr.bf16.mxu0 0
        %886 = vmatpush1.bf16.msra.mxu0 0
        %887 = vmatprep.subr.bf16.mxu0 0
        %888 = vmatpush1.bf16.msra.mxu0 0
        %889 = vmatprep.subr.bf16.mxu0 0
        %890 = vmatpush1.bf16.msra.mxu0 0
        %891 = vmatprep.mubr.bf16.mxu0 0
        %892 = vmatmul.mubr.bf16.gmra.mrb[0].mxu0 %v833
        %v893 = vpop.f32.mrb[0].mxu0
        %v894 = vadd.f32 0.0, %v893
        %v895 = vpop.f32.mrb[0].mxu0
        %v896 = vpop.f32.mrb[0].mxu0
        %v897 = vadd.f32 0.0, %v896
        %v898 = vpop.f32.mrb[0].mxu0
        %899 = vmatprep.mubr.bf16.mxu0 0
        %900 = vmatmul.mubr.bf16.gmra.mrb[0].mxu0 %v836
        %v901 = vpop.f32.mrb[0].mxu0
        %v902 = vadd.f32 0.0, %v901
        %v903 = vpop.f32.mrb[0].mxu0
        %v904 = vpop.f32.mrb[0].mxu0
        %v905 = vadd.f32 0.0, %v904
        %v906 = vpop.f32.mrb[0].mxu0
        %907 = vmatprep.mubr.bf16.mxu0 0
        %908 = vmatmul.mubr.bf16.gmra.mrb[0].mxu0 %v839
        %v909 = vpop.f32.mrb[0].mxu0
        %v910 = vadd.f32 0.0, %v909
        %v911 = vpop.f32.mrb[0].mxu0
        %v912 = vpop.f32.mrb[0].mxu0
        %v913 = vadd.f32 0.0, %v912
        %v914 = vpop.f32.mrb[0].mxu0
        %915 = vmatprep.mubr.bf16.mxu0 0
        %916 = vmatmul.mubr.bf16.gmra.mrb[0].mxu0 %v842
        %v917 = vpop.f32.mrb[0].mxu0
        %v918 = vadd.f32 0.0, %v917
        %v919 = vpop.f32.mrb[0].mxu0
        %v920 = vpop.f32.mrb[0].mxu0
        %v921 = vadd.f32 0.0, %v920
        %v922 = vpop.f32.mrb[0].mxu0
        %923 = vmatprep.mubr.bf16.mxu0 0
        %924 = vmatmul.mubr.bf16.gmra.mrb[0].mxu0 %v845
        %v925 = vpop.f32.mrb[0].mxu0
        %v926 = vadd.f32 0.0, %v925
        %v927 = vpop.f32.mrb[0].mxu0
        %v928 = vpop.f32.mrb[0].mxu0
        %v929 = vadd.f32 0.0, %v928
        %v930 = vpop.f32.mrb[0].mxu0
        %931 = vmatprep.mubr.bf16.mxu0 0
        %932 = vmatmul.mubr.bf16.gmra.mrb[0].mxu0 %v848
        %v933 = vpop.f32.mrb[0].mxu0
        %v934 = vadd.f32 0.0, %v933
        %v935 = vpop.f32.mrb[0].mxu0
        %v936 = vpop.f32.mrb[0].mxu0
        %v937 = vadd.f32 0.0, %v936
        %v938 = vpop.f32.mrb[0].mxu0
        %939 = vmatprep.mubr.bf16.mxu0 0
        %940 = vmatmul.mubr.bf16.gmra.mrb[0].mxu0 %v851
        %v941 = vpop.f32.mrb[0].mxu0
        %v942 = vadd.f32 0.0, %v941
        %v943 = vpop.f32.mrb[0].mxu0
        %v944 = vpop.f32.mrb[0].mxu0
        %v945 = vadd.f32 0.0, %v944
        %v946 = vpop.f32.mrb[0].mxu0
        %947 = vmatprep.mubr.bf16.mxu0 0
        %948 = vmatmul.mubr.bf16.gmra.mrb[0].mxu0 %v854
        %v949 = vpop.f32.mrb[0].mxu0
        %v950 = vadd.f32 0.0, %v949
        %v951 = vpop.f32.mrb[0].mxu0
        %v952 = vpop.f32.mrb[0].mxu0
        %v953 = vadd.f32 0.0, %v952
        %v954 = vpop.f32.mrb[0].mxu0
        %955 = vdwg.mxu0
        %956 = vxpose.xlu0.c.b16.start [1/8] %v654, 128
        %957 = vxpose.xlu0.c.b16.cont [2/8] 0, 128
        %958 = vxpose.xlu0.c.b16.cont [3/8] 0, 128
        %959 = vxpose.xlu0.c.b16.cont [4/8] 0, 128
        %960 = vxpose.xlu0.c.b16.cont [5/8] 0, 128
        %961 = vxpose.xlu0.c.b16.cont [6/8] 0, 128
        %962 = vxpose.xlu0.c.b16.cont [7/8] 0, 128
        %963 = vxpose.xlu0.c.b16.end [8/8] 0, 128
        %v964 = vpop.trf.xlu0
        %v965 = vpop.trf.xlu0
        %v966 = vpop.trf.xlu0
        %v967 = vpop.trf.xlu0
        %v968 = vpop.trf.xlu0
        %v969 = vpop.trf.xlu0
        %v970 = vpop.trf.xlu0
        %v971 = vpop.trf.xlu0
        %v973 = vsel %vm690, %v964, 0
        %v976 = vsel %vm690, %v965, 0
        %v979 = vsel %vm690, %v966, 0
        %v982 = vsel %vm690, %v967, 0
        %v985 = vsel %vm690, %v968, 0
        %v988 = vsel %vm690, %v969, 0
        %v991 = vsel %vm690, %v970, 0
        %v994 = vsel %vm690, %v971, 0
        %v997 = vsel %vm715, %v664, 0
        %999 = vmatprep.subr.bf16.mxu0 0
        %1000 = vmatpush1.bf16.msra.mxu0 %v997
        %1001 = vmatprep.subr.bf16.mxu0 0
        %1002 = vmatpush1.bf16.msra.mxu0 0
        %1003 = vmatprep.subr.bf16.mxu0 0
        %1004 = vmatpush1.bf16.msra.mxu0 0
        %1005 = vmatprep.subr.bf16.mxu0 0
        %1006 = vmatpush1.bf16.msra.mxu0 0
        %1007 = vmatprep.subr.bf16.mxu0 0
        %1008 = vmatpush1.bf16.msra.mxu0 0
        %1009 = vmatprep.subr.bf16.mxu0 0
        %1010 = vmatpush1.bf16.msra.mxu0 0
        %1011 = vmatprep.subr.bf16.mxu0 0
        %1012 = vmatpush1.bf16.msra.mxu0 0
        %1013 = vmatprep.subr.bf16.mxu0 0
        %1014 = vmatpush1.bf16.msra.mxu0 0
        %1015 = vmatprep.subr.bf16.mxu0 0
        %1016 = vmatpush1.bf16.msra.mxu0 0
        %1017 = vmatprep.subr.bf16.mxu0 0
        %1018 = vmatpush1.bf16.msra.mxu0 0
        %1019 = vmatprep.subr.bf16.mxu0 0
        %1020 = vmatpush1.bf16.msra.mxu0 0
        %1021 = vmatprep.subr.bf16.mxu0 0
        %1022 = vmatpush1.bf16.msra.mxu0 0
        %1023 = vmatprep.subr.bf16.mxu0 0
        %1024 = vmatpush1.bf16.msra.mxu0 0
        %1025 = vmatprep.subr.bf16.mxu0 0
        %1026 = vmatpush1.bf16.msra.mxu0 0
        %1027 = vmatprep.subr.bf16.mxu0 0
        %1028 = vmatpush1.bf16.msra.mxu0 0
        %1029 = vmatprep.subr.bf16.mxu0 0
        %1030 = vmatpush1.bf16.msra.mxu0 0
        %1031 = vmatprep.mubr.bf16.mxu0 0
        %1032 = vmatmul.mubr.bf16.gmra.mrb[0].mxu0 %v973
        %v1033 = vpop.f32.mrb[0].mxu0
        %v1034 = vadd.f32 0.0, %v1033
        %v1035 = vpop.f32.mrb[0].mxu0
        %v1036 = vpop.f32.mrb[0].mxu0
        %v1037 = vadd.f32 0.0, %v1036
        %v1038 = vpop.f32.mrb[0].mxu0
        %1039 = vmatprep.mubr.bf16.mxu0 0
        %1040 = vmatmul.mubr.bf16.gmra.mrb[0].mxu0 %v976
        %v1041 = vpop.f32.mrb[0].mxu0
        %v1042 = vadd.f32 0.0, %v1041
        %v1043 = vpop.f32.mrb[0].mxu0
        %v1044 = vpop.f32.mrb[0].mxu0
        %v1045 = vadd.f32 0.0, %v1044
        %v1046 = vpop.f32.mrb[0].mxu0
        %1047 = vmatprep.mubr.bf16.mxu0 0
        %1048 = vmatmul.mubr.bf16.gmra.mrb[0].mxu0 %v979
        %v1049 = vpop.f32.mrb[0].mxu0
        %v1050 = vadd.f32 0.0, %v1049
        %v1051 = vpop.f32.mrb[0].mxu0
        %v1052 = vpop.f32.mrb[0].mxu0
        %v1053 = vadd.f32 0.0, %v1052
        %v1054 = vpop.f32.mrb[0].mxu0
        %1055 = vmatprep.mubr.bf16.mxu0 0
        %1056 = vmatmul.mubr.bf16.gmra.mrb[0].mxu0 %v982
        %v1057 = vpop.f32.mrb[0].mxu0
        %v1058 = vadd.f32 0.0, %v1057
        %v1059 = vpop.f32.mrb[0].mxu0
        %v1060 = vpop.f32.mrb[0].mxu0
        %v1061 = vadd.f32 0.0, %v1060
        %v1062 = vpop.f32.mrb[0].mxu0
        %1063 = vmatprep.mubr.bf16.mxu0 0
        %1064 = vmatmul.mubr.bf16.gmra.mrb[0].mxu0 %v985
        %v1065 = vpop.f32.mrb[0].mxu0
        %v1066 = vadd.f32 0.0, %v1065
        %v1067 = vpop.f32.mrb[0].mxu0
        %v1068 = vpop.f32.mrb[0].mxu0
        %v1069 = vadd.f32 0.0, %v1068
        %v1070 = vpop.f32.mrb[0].mxu0
        %1071 = vmatprep.mubr.bf16.mxu0 0
        %1072 = vmatmul.mubr.bf16.gmra.mrb[0].mxu0 %v988
        %v1073 = vpop.f32.mrb[0].mxu0
        %v1074 = vadd.f32 0.0, %v1073
        %v1075 = vpop.f32.mrb[0].mxu0
        %v1076 = vpop.f32.mrb[0].mxu0
        %v1077 = vadd.f32 0.0, %v1076
        %v1078 = vpop.f32.mrb[0].mxu0
        %1079 = vmatprep.mubr.bf16.mxu0 0
        %1080 = vmatmul.mubr.bf16.gmra.mrb[0].mxu0 %v991
        %v1081 = vpop.f32.mrb[0].mxu0
        %v1082 = vadd.f32 0.0, %v1081
        %v1083 = vpop.f32.mrb[0].mxu0
        %v1084 = vpop.f32.mrb[0].mxu0
        %v1085 = vadd.f32 0.0, %v1084
        %v1086 = vpop.f32.mrb[0].mxu0
        %1087 = vmatprep.mubr.bf16.mxu0 0
        %1088 = vmatmul.mubr.bf16.gmra.mrb[0].mxu0 %v994
        %v1089 = vpop.f32.mrb[0].mxu0
        %v1090 = vadd.f32 0.0, %v1089
        %v1091 = vpop.f32.mrb[0].mxu0
        %v1092 = vpop.f32.mrb[0].mxu0
        %v1093 = vadd.f32 0.0, %v1092
        %v1094 = vpop.f32.mrb[0].mxu0
        %1095 = vdwg.mxu0
        %1096 = vxpose.xlu0.c.b16.start [1/8] %v655, 128
        %1097 = vxpose.xlu0.c.b16.cont [2/8] 0, 128
        %1098 = vxpose.xlu0.c.b16.cont [3/8] 0, 128
        %1099 = vxpose.xlu0.c.b16.cont [4/8] 0, 128
        %1100 = vxpose.xlu0.c.b16.cont [5/8] 0, 128
        %1101 = vxpose.xlu0.c.b16.cont [6/8] 0, 128
        %1102 = vxpose.xlu0.c.b16.cont [7/8] 0, 128
        %1103 = vxpose.xlu0.c.b16.end [8/8] 0, 128
        %v1104 = vpop.trf.xlu0
        %v1105 = vpop.trf.xlu0
        %v1106 = vpop.trf.xlu0
        %v1107 = vpop.trf.xlu0
        %v1108 = vpop.trf.xlu0
        %v1109 = vpop.trf.xlu0
        %v1110 = vpop.trf.xlu0
        %v1111 = vpop.trf.xlu0
        %v1113 = vsel %vm690, %v1104, 0
        %v1116 = vsel %vm690, %v1105, 0
        %v1119 = vsel %vm690, %v1106, 0
        %v1122 = vsel %vm690, %v1107, 0
        %v1125 = vsel %vm690, %v1108, 0
        %v1128 = vsel %vm690, %v1109, 0
        %v1131 = vsel %vm690, %v1110, 0
        %v1134 = vsel %vm690, %v1111, 0
        %v1137 = vsel %vm715, %v665, 0
        %1139 = vmatprep.subr.bf16.mxu0 0
        %1140 = vmatpush1.bf16.msra.mxu0 %v1137
        %1141 = vmatprep.subr.bf16.mxu0 0
        %1142 = vmatpush1.bf16.msra.mxu0 0
        %1143 = vmatprep.subr.bf16.mxu0 0
        %1144 = vmatpush1.bf16.msra.mxu0 0
        %1145 = vmatprep.subr.bf16.mxu0 0
        %1146 = vmatpush1.bf16.msra.mxu0 0
        %1147 = vmatprep.subr.bf16.mxu0 0
        %1148 = vmatpush1.bf16.msra.mxu0 0
        %1149 = vmatprep.subr.bf16.mxu0 0
        %1150 = vmatpush1.bf16.msra.mxu0 0
        %1151 = vmatprep.subr.bf16.mxu0 0
        %1152 = vmatpush1.bf16.msra.mxu0 0
        %1153 = vmatprep.subr.bf16.mxu0 0
        %1154 = vmatpush1.bf16.msra.mxu0 0
        %1155 = vmatprep.subr.bf16.mxu0 0
        %1156 = vmatpush1.bf16.msra.mxu0 0
        %1157 = vmatprep.subr.bf16.mxu0 0
        %1158 = vmatpush1.bf16.msra.mxu0 0
        %1159 = vmatprep.subr.bf16.mxu0 0
        %1160 = vmatpush1.bf16.msra.mxu0 0
        %1161 = vmatprep.subr.bf16.mxu0 0
        %1162 = vmatpush1.bf16.msra.mxu0 0
        %1163 = vmatprep.subr.bf16.mxu0 0
        %1164 = vmatpush1.bf16.msra.mxu0 0
        %1165 = vmatprep.subr.bf16.mxu0 0
        %1166 = vmatpush1.bf16.msra.mxu0 0
        %1167 = vmatprep.subr.bf16.mxu0 0
        %1168 = vmatpush1.bf16.msra.mxu0 0
        %1169 = vmatprep.subr.bf16.mxu0 0
        %1170 = vmatpush1.bf16.msra.mxu0 0
        %1171 = vmatprep.mubr.bf16.mxu0 0
        %1172 = vmatmul.mubr.bf16.gmra.mrb[0].mxu0 %v1113
        %v1173 = vpop.f32.mrb[0].mxu0
        %v1174 = vadd.f32 0.0, %v1173
        %v1175 = vpop.f32.mrb[0].mxu0
        %v1176 = vpop.f32.mrb[0].mxu0
        %v1177 = vadd.f32 0.0, %v1176
        %v1178 = vpop.f32.mrb[0].mxu0
        %1179 = vmatprep.mubr.bf16.mxu0 0
        %1180 = vmatmul.mubr.bf16.gmra.mrb[0].mxu0 %v1116
        %v1181 = vpop.f32.mrb[0].mxu0
        %v1182 = vadd.f32 0.0, %v1181
        %v1183 = vpop.f32.mrb[0].mxu0
        %v1184 = vpop.f32.mrb[0].mxu0
        %v1185 = vadd.f32 0.0, %v1184
        %v1186 = vpop.f32.mrb[0].mxu0
        %1187 = vmatprep.mubr.bf16.mxu0 0
        %1188 = vmatmul.mubr.bf16.gmra.mrb[0].mxu0 %v1119
        %v1189 = vpop.f32.mrb[0].mxu0
        %v1190 = vadd.f32 0.0, %v1189
        %v1191 = vpop.f32.mrb[0].mxu0
        %v1192 = vpop.f32.mrb[0].mxu0
        %v1193 = vadd.f32 0.0, %v1192
        %v1194 = vpop.f32.mrb[0].mxu0
        %1195 = vmatprep.mubr.bf16.mxu0 0
        %1196 = vmatmul.mubr.bf16.gmra.mrb[0].mxu0 %v1122
        %v1197 = vpop.f32.mrb[0].mxu0
        %v1198 = vadd.f32 0.0, %v1197
        %v1199 = vpop.f32.mrb[0].mxu0
        %v1200 = vpop.f32.mrb[0].mxu0
        %v1201 = vadd.f32 0.0, %v1200
        %v1202 = vpop.f32.mrb[0].mxu0
        %1203 = vmatprep.mubr.bf16.mxu0 0
        %1204 = vmatmul.mubr.bf16.gmra.mrb[0].mxu0 %v1125
        %v1205 = vpop.f32.mrb[0].mxu0
        %v1206 = vadd.f32 0.0, %v1205
        %v1207 = vpop.f32.mrb[0].mxu0
        %v1208 = vpop.f32.mrb[0].mxu0
        %v1209 = vadd.f32 0.0, %v1208
        %v1210 = vpop.f32.mrb[0].mxu0
        %1211 = vmatprep.mubr.bf16.mxu0 0
        %1212 = vmatmul.mubr.bf16.gmra.mrb[0].mxu0 %v1128
        %v1213 = vpop.f32.mrb[0].mxu0
        %v1214 = vadd.f32 0.0, %v1213
        %v1215 = vpop.f32.mrb[0].mxu0
        %v1216 = vpop.f32.mrb[0].mxu0
        %v1217 = vadd.f32 0.0, %v1216
        %v1218 = vpop.f32.mrb[0].mxu0
        %1219 = vmatprep.mubr.bf16.mxu0 0
        %1220 = vmatmul.mubr.bf16.gmra.mrb[0].mxu0 %v1131
        %v1221 = vpop.f32.mrb[0].mxu0
        %v1222 = vadd.f32 0.0, %v1221
        %v1223 = vpop.f32.mrb[0].mxu0
        %v1224 = vpop.f32.mrb[0].mxu0
        %v1225 = vadd.f32 0.0, %v1224
        %v1226 = vpop.f32.mrb[0].mxu0
        %1227 = vmatprep.mubr.bf16.mxu0 0
        %1228 = vmatmul.mubr.bf16.gmra.mrb[0].mxu0 %v1134
        %v1229 = vpop.f32.mrb[0].mxu0
        %v1230 = vadd.f32 0.0, %v1229
        %v1231 = vpop.f32.mrb[0].mxu0
        %v1232 = vpop.f32.mrb[0].mxu0
        %v1233 = vadd.f32 0.0, %v1232
        %v1234 = vpop.f32.mrb[0].mxu0
        %1235 = vdwg.mxu0
        %1236 = vmax.xlane.f32.xlu0 %v754
        %v1237 = vpop.xlane.xlu0 %1236
        %1238 = vmax.xlane.f32.xlu0 %v757
        %v1239 = vpop.xlane.xlu0 %1238
        %1240 = vmax.xlane.f32.xlu0 %v762
        %v1241 = vpop.xlane.xlu0 %1240
        %1242 = vmax.xlane.f32.xlu0 %v765
        %v1243 = vpop.xlane.xlu0 %1242
        %1244 = vmax.xlane.f32.xlu0 %v770
        %v1245 = vpop.xlane.xlu0 %1244
        %1246 = vmax.xlane.f32.xlu0 %v773
        %v1247 = vpop.xlane.xlu0 %1246
        %1248 = vmax.xlane.f32.xlu0 %v778
        %v1249 = vpop.xlane.xlu0 %1248
        %1250 = vmax.xlane.f32.xlu0 %v781
        %v1251 = vpop.xlane.xlu0 %1250
        %1252 = vmax.xlane.f32.xlu0 %v786
        %v1253 = vpop.xlane.xlu0 %1252
        %1254 = vmax.xlane.f32.xlu0 %v789
        %v1255 = vpop.xlane.xlu0 %1254
        %1256 = vmax.xlane.f32.xlu0 %v794
        %v1257 = vpop.xlane.xlu0 %1256
        %1258 = vmax.xlane.f32.xlu0 %v797
        %v1259 = vpop.xlane.xlu0 %1258
        %1260 = vmax.xlane.f32.xlu0 %v802
        %v1261 = vpop.xlane.xlu0 %1260
        %1262 = vmax.xlane.f32.xlu0 %v805
        %v1263 = vpop.xlane.xlu0 %1262
        %1264 = vmax.xlane.f32.xlu0 %v810
        %v1265 = vpop.xlane.xlu0 %1264
        %1266 = vmax.xlane.f32.xlu0 %v813
        %v1267 = vpop.xlane.xlu0 %1266
        %1268 = vmax.xlane.f32.xlu0 %v894
        %v1269 = vpop.xlane.xlu0 %1268
        %1270 = vmax.xlane.f32.xlu0 %v897
        %v1271 = vpop.xlane.xlu0 %1270
        %1272 = vmax.xlane.f32.xlu0 %v902
        %v1273 = vpop.xlane.xlu0 %1272
        %1274 = vmax.xlane.f32.xlu0 %v905
        %v1275 = vpop.xlane.xlu0 %1274
        %1276 = vmax.xlane.f32.xlu0 %v910
        %v1277 = vpop.xlane.xlu0 %1276
        %1278 = vmax.xlane.f32.xlu0 %v913
        %v1279 = vpop.xlane.xlu0 %1278
        %1280 = vmax.xlane.f32.xlu0 %v918
        %v1281 = vpop.xlane.xlu0 %1280
        %1282 = vmax.xlane.f32.xlu0 %v921
        %v1283 = vpop.xlane.xlu0 %1282
        %1284 = vmax.xlane.f32.xlu0 %v926
        %v1285 = vpop.xlane.xlu0 %1284
        %1286 = vmax.xlane.f32.xlu0 %v929
        %v1287 = vpop.xlane.xlu0 %1286
        %1288 = vmax.xlane.f32.xlu0 %v934
        %v1289 = vpop.xlane.xlu0 %1288
        %1290 = vmax.xlane.f32.xlu0 %v937
        %v1291 = vpop.xlane.xlu0 %1290
        %1292 = vmax.xlane.f32.xlu0 %v942
        %v1293 = vpop.xlane.xlu0 %1292
        %1294 = vmax.xlane.f32.xlu0 %v945
        %v1295 = vpop.xlane.xlu0 %1294
        %1296 = vmax.xlane.f32.xlu0 %v950
        %v1297 = vpop.xlane.xlu0 %1296
        %1298 = vmax.xlane.f32.xlu0 %v953
        %v1299 = vpop.xlane.xlu0 %1298
        %1300 = vmax.xlane.f32.xlu0 %v1034
        %v1301 = vpop.xlane.xlu0 %1300
        %1302 = vmax.xlane.f32.xlu0 %v1037
        %v1303 = vpop.xlane.xlu0 %1302
        %1304 = vmax.xlane.f32.xlu0 %v1042
        %v1305 = vpop.xlane.xlu0 %1304
        %1306 = vmax.xlane.f32.xlu0 %v1045
        %v1307 = vpop.xlane.xlu0 %1306
        %1308 = vmax.xlane.f32.xlu0 %v1050
        %v1309 = vpop.xlane.xlu0 %1308
        %1310 = vmax.xlane.f32.xlu0 %v1053
        %v1311 = vpop.xlane.xlu0 %1310
        %1312 = vmax.xlane.f32.xlu0 %v1058
        %v1313 = vpop.xlane.xlu0 %1312
        %1314 = vmax.xlane.f32.xlu0 %v1061
        %v1315 = vpop.xlane.xlu0 %1314
        %1316 = vmax.xlane.f32.xlu0 %v1066
        %v1317 = vpop.xlane.xlu0 %1316
        %1318 = vmax.xlane.f32.xlu0 %v1069
        %v1319 = vpop.xlane.xlu0 %1318
        %1320 = vmax.xlane.f32.xlu0 %v1074
        %v1321 = vpop.xlane.xlu0 %1320
        %1322 = vmax.xlane.f32.xlu0 %v1077
        %v1323 = vpop.xlane.xlu0 %1322
        %1324 = vmax.xlane.f32.xlu0 %v1082
        %v1325 = vpop.xlane.xlu0 %1324
        %1326 = vmax.xlane.f32.xlu0 %v1085
        %v1327 = vpop.xlane.xlu0 %1326
        %1328 = vmax.xlane.f32.xlu0 %v1090
        %v1329 = vpop.xlane.xlu0 %1328
        %1330 = vmax.xlane.f32.xlu0 %v1093
        %v1331 = vpop.xlane.xlu0 %1330
        %1332 = vmax.xlane.f32.xlu0 %v1174
        %v1333 = vpop.xlane.xlu0 %1332
        %1334 = vmax.xlane.f32.xlu0 %v1177
        %v1335 = vpop.xlane.xlu0 %1334
        %1336 = vmax.xlane.f32.xlu0 %v1182
        %v1337 = vpop.xlane.xlu0 %1336
        %1338 = vmax.xlane.f32.xlu0 %v1185
        %v1339 = vpop.xlane.xlu0 %1338
        %1340 = vmax.xlane.f32.xlu0 %v1190
        %v1341 = vpop.xlane.xlu0 %1340
        %1342 = vmax.xlane.f32.xlu0 %v1193
        %v1343 = vpop.xlane.xlu0 %1342
        %1344 = vmax.xlane.f32.xlu0 %v1198
        %v1345 = vpop.xlane.xlu0 %1344
        %1346 = vmax.xlane.f32.xlu0 %v1201
        %v1347 = vpop.xlane.xlu0 %1346
        %1348 = vmax.xlane.f32.xlu0 %v1206
        %v1349 = vpop.xlane.xlu0 %1348
        %1350 = vmax.xlane.f32.xlu0 %v1209
        %v1351 = vpop.xlane.xlu0 %1350
        %1352 = vmax.xlane.f32.xlu0 %v1214
        %v1353 = vpop.xlane.xlu0 %1352
        %1354 = vmax.xlane.f32.xlu0 %v1217
        %v1355 = vpop.xlane.xlu0 %1354
        %1356 = vmax.xlane.f32.xlu0 %v1222
        %v1357 = vpop.xlane.xlu0 %1356
        %1358 = vmax.xlane.f32.xlu0 %v1225
        %v1359 = vpop.xlane.xlu0 %1358
        %1360 = vmax.xlane.f32.xlu0 %v1230
        %v1361 = vpop.xlane.xlu0 %1360
        %1362 = vmax.xlane.f32.xlu0 %v1233
        %v1363 = vpop.xlane.xlu0 %1362
        %v1364 = vsub.f32 %v754, %v1237
        %v1365 = vsub.f32 %v757, %v1239
        %v1366 = vsub.f32 %v762, %v1241
        %v1367 = vsub.f32 %v765, %v1243
        %v1368 = vsub.f32 %v770, %v1245
        %v1369 = vsub.f32 %v773, %v1247
        %v1370 = vsub.f32 %v778, %v1249
        %v1371 = vsub.f32 %v781, %v1251
        %v1372 = vsub.f32 %v786, %v1253
        %v1373 = vsub.f32 %v789, %v1255
        %v1374 = vsub.f32 %v794, %v1257
        %v1375 = vsub.f32 %v797, %v1259
        %v1376 = vsub.f32 %v802, %v1261
        %v1377 = vsub.f32 %v805, %v1263
        %v1378 = vsub.f32 %v810, %v1265
        %v1379 = vsub.f32 %v813, %v1267
        %v1380 = vsub.f32 %v894, %v1269
        %v1381 = vsub.f32 %v897, %v1271
        %v1382 = vsub.f32 %v902, %v1273
        %v1383 = vsub.f32 %v905, %v1275
        %v1384 = vsub.f32 %v910, %v1277
        %v1385 = vsub.f32 %v913, %v1279
        %v1386 = vsub.f32 %v918, %v1281
        %v1387 = vsub.f32 %v921, %v1283
        %v1388 = vsub.f32 %v926, %v1285
        %v1389 = vsub.f32 %v929, %v1287
        %v1390 = vsub.f32 %v934, %v1289
        %v1391 = vsub.f32 %v937, %v1291
        %v1392 = vsub.f32 %v942, %v1293
        %v1393 = vsub.f32 %v945, %v1295
        %v1394 = vsub.f32 %v950, %v1297
        %v1395 = vsub.f32 %v953, %v1299
        %v1396 = vsub.f32 %v1034, %v1301
        %v1397 = vsub.f32 %v1037, %v1303
        %v1398 = vsub.f32 %v1042, %v1305
        %v1399 = vsub.f32 %v1045, %v1307
        %v1400 = vsub.f32 %v1050, %v1309
        %v1401 = vsub.f32 %v1053, %v1311
        %v1402 = vsub.f32 %v1058, %v1313
        %v1403 = vsub.f32 %v1061, %v1315
        %v1404 = vsub.f32 %v1066, %v1317
        %v1405 = vsub.f32 %v1069, %v1319
        %v1406 = vsub.f32 %v1074, %v1321
        %v1407 = vsub.f32 %v1077, %v1323
        %v1408 = vsub.f32 %v1082, %v1325
        %v1409 = vsub.f32 %v1085, %v1327
        %v1410 = vsub.f32 %v1090, %v1329
        %v1411 = vsub.f32 %v1093, %v1331
        %v1412 = vsub.f32 %v1174, %v1333
        %v1413 = vsub.f32 %v1177, %v1335
        %v1414 = vsub.f32 %v1182, %v1337
        %v1415 = vsub.f32 %v1185, %v1339
        %v1416 = vsub.f32 %v1190, %v1341
        %v1417 = vsub.f32 %v1193, %v1343
        %v1418 = vsub.f32 %v1198, %v1345
        %v1419 = vsub.f32 %v1201, %v1347
        %v1420 = vsub.f32 %v1206, %v1349
        %v1421 = vsub.f32 %v1209, %v1351
        %v1422 = vsub.f32 %v1214, %v1353
        %v1423 = vsub.f32 %v1217, %v1355
        %v1424 = vsub.f32 %v1222, %v1357
        %v1425 = vsub.f32 %v1225, %v1359
        %v1426 = vsub.f32 %v1230, %v1361
        %v1427 = vsub.f32 %v1233, %v1363
        %v1428 = vmul.f32 %v1364, 1.442695
        %v1429 = vpow.pop %v1428
        %v1430 = vmul.f32 %v1365, 1.442695
        %v1431 = vpow.pop %v1430
        %v1432 = vmul.f32 %v1366, 1.442695
        %v1433 = vpow.pop %v1432
        %v1434 = vmul.f32 %v1367, 1.442695
        %v1435 = vpow.pop %v1434
        %v1436 = vmul.f32 %v1368, 1.442695
        %v1437 = vpow.pop %v1436
        %v1438 = vmul.f32 %v1369, 1.442695
        %v1439 = vpow.pop %v1438
        %v1440 = vmul.f32 %v1370, 1.442695
        %v1441 = vpow.pop %v1440
        %v1442 = vmul.f32 %v1371, 1.442695
        %v1443 = vpow.pop %v1442
        %v1444 = vmul.f32 %v1372, 1.442695
        %v1445 = vpow.pop %v1444
        %v1446 = vmul.f32 %v1373, 1.442695
        %v1447 = vpow.pop %v1446
        %v1448 = vmul.f32 %v1374, 1.442695
        %v1449 = vpow.pop %v1448
        %v1450 = vmul.f32 %v1375, 1.442695
        %v1451 = vpow.pop %v1450
        %v1452 = vmul.f32 %v1376, 1.442695
        %v1453 = vpow.pop %v1452
        %v1454 = vmul.f32 %v1377, 1.442695
        %v1455 = vpow.pop %v1454
        %v1456 = vmul.f32 %v1378, 1.442695
        %v1457 = vpow.pop %v1456
        %v1458 = vmul.f32 %v1379, 1.442695
        %v1459 = vpow.pop %v1458
        %v1460 = vmul.f32 %v1380, 1.442695
        %v1461 = vpow.pop %v1460
        %v1462 = vmul.f32 %v1381, 1.442695
        %v1463 = vpow.pop %v1462
        %v1464 = vmul.f32 %v1382, 1.442695
        %v1465 = vpow.pop %v1464
        %v1466 = vmul.f32 %v1383, 1.442695
        %v1467 = vpow.pop %v1466
        %v1468 = vmul.f32 %v1384, 1.442695
        %v1469 = vpow.pop %v1468
        %v1470 = vmul.f32 %v1385, 1.442695
        %v1471 = vpow.pop %v1470
        %v1472 = vmul.f32 %v1386, 1.442695
        %v1473 = vpow.pop %v1472
        %v1474 = vmul.f32 %v1387, 1.442695
        %v1475 = vpow.pop %v1474
        %v1476 = vmul.f32 %v1388, 1.442695
        %v1477 = vpow.pop %v1476
        %v1478 = vmul.f32 %v1389, 1.442695
        %v1479 = vpow.pop %v1478
        %v1480 = vmul.f32 %v1390, 1.442695
        %v1481 = vpow.pop %v1480
        %v1482 = vmul.f32 %v1391, 1.442695
        %v1483 = vpow.pop %v1482
        %v1484 = vmul.f32 %v1392, 1.442695
        %v1485 = vpow.pop %v1484
        %v1486 = vmul.f32 %v1393, 1.442695
        %v1487 = vpow.pop %v1486
        %v1488 = vmul.f32 %v1394, 1.442695
        %v1489 = vpow.pop %v1488
        %v1490 = vmul.f32 %v1395, 1.442695
        %v1491 = vpow.pop %v1490
        %v1492 = vmul.f32 %v1396, 1.442695
        %v1493 = vpow.pop %v1492
        %v1494 = vmul.f32 %v1397, 1.442695
        %v1495 = vpow.pop %v1494
        %v1496 = vmul.f32 %v1398, 1.442695
        %v1497 = vpow.pop %v1496
        %v1498 = vmul.f32 %v1399, 1.442695
        %v1499 = vpow.pop %v1498
        %v1500 = vmul.f32 %v1400, 1.442695
        %v1501 = vpow.pop %v1500
        %v1502 = vmul.f32 %v1401, 1.442695
        %v1503 = vpow.pop %v1502
        %v1504 = vmul.f32 %v1402, 1.442695
        %v1505 = vpow.pop %v1504
        %v1506 = vmul.f32 %v1403, 1.442695
        %v1507 = vpow.pop %v1506
        %v1508 = vmul.f32 %v1404, 1.442695
        %v1509 = vpow.pop %v1508
        %v1510 = vmul.f32 %v1405, 1.442695
        %v1511 = vpow.pop %v1510
        %v1512 = vmul.f32 %v1406, 1.442695
        %v1513 = vpow.pop %v1512
        %v1514 = vmul.f32 %v1407, 1.442695
        %v1515 = vpow.pop %v1514
        %v1516 = vmul.f32 %v1408, 1.442695
        %v1517 = vpow.pop %v1516
        %v1518 = vmul.f32 %v1409, 1.442695
        %v1519 = vpow.pop %v1518
        %v1520 = vmul.f32 %v1410, 1.442695
        %v1521 = vpow.pop %v1520
        %v1522 = vmul.f32 %v1411, 1.442695
        %v1523 = vpow.pop %v1522
        %v1524 = vmul.f32 %v1412, 1.442695
        %v1525 = vpow.pop %v1524
        %v1526 = vmul.f32 %v1413, 1.442695
        %v1527 = vpow.pop %v1526
        %v1528 = vmul.f32 %v1414, 1.442695
        %v1529 = vpow.pop %v1528
        %v1530 = vmul.f32 %v1415, 1.442695
        %v1531 = vpow.pop %v1530
        %v1532 = vmul.f32 %v1416, 1.442695
        %v1533 = vpow.pop %v1532
        %v1534 = vmul.f32 %v1417, 1.442695
        %v1535 = vpow.pop %v1534
        %v1536 = vmul.f32 %v1418, 1.442695
        %v1537 = vpow.pop %v1536
        %v1538 = vmul.f32 %v1419, 1.442695
        %v1539 = vpow.pop %v1538
        %v1540 = vmul.f32 %v1420, 1.442695
        %v1541 = vpow.pop %v1540
        %v1542 = vmul.f32 %v1421, 1.442695
        %v1543 = vpow.pop %v1542
        %v1544 = vmul.f32 %v1422, 1.442695
        %v1545 = vpow.pop %v1544
        %v1546 = vmul.f32 %v1423, 1.442695
        %v1547 = vpow.pop %v1546
        %v1548 = vmul.f32 %v1424, 1.442695
        %v1549 = vpow.pop %v1548
        %v1550 = vmul.f32 %v1425, 1.442695
        %v1551 = vpow.pop %v1550
        %v1552 = vmul.f32 %v1426, 1.442695
        %v1553 = vpow.pop %v1552
        %v1554 = vmul.f32 %v1427, 1.442695
        %v1555 = vpow.pop %v1554
        %1556 = vadd.xlane.f32.xlu0 %v1429
        %v1557 = vpop.xlane.xlu0 %1556
        %1558 = vadd.xlane.f32.xlu0 %v1431
        %v1559 = vpop.xlane.xlu0 %1558
        %1560 = vadd.xlane.f32.xlu0 %v1433
        %v1561 = vpop.xlane.xlu0 %1560
        %1562 = vadd.xlane.f32.xlu0 %v1435
        %v1563 = vpop.xlane.xlu0 %1562
        %1564 = vadd.xlane.f32.xlu0 %v1437
        %v1565 = vpop.xlane.xlu0 %1564
        %1566 = vadd.xlane.f32.xlu0 %v1439
        %v1567 = vpop.xlane.xlu0 %1566
        %1568 = vadd.xlane.f32.xlu0 %v1441
        %v1569 = vpop.xlane.xlu0 %1568
        %1570 = vadd.xlane.f32.xlu0 %v1443
        %v1571 = vpop.xlane.xlu0 %1570
        %1572 = vadd.xlane.f32.xlu0 %v1445
        %v1573 = vpop.xlane.xlu0 %1572
        %1574 = vadd.xlane.f32.xlu0 %v1447
        %v1575 = vpop.xlane.xlu0 %1574
        %1576 = vadd.xlane.f32.xlu0 %v1449
        %v1577 = vpop.xlane.xlu0 %1576
        %1578 = vadd.xlane.f32.xlu0 %v1451
        %v1579 = vpop.xlane.xlu0 %1578
        %1580 = vadd.xlane.f32.xlu0 %v1453
        %v1581 = vpop.xlane.xlu0 %1580
        %1582 = vadd.xlane.f32.xlu0 %v1455
        %v1583 = vpop.xlane.xlu0 %1582
        %1584 = vadd.xlane.f32.xlu0 %v1457
        %v1585 = vpop.xlane.xlu0 %1584
        %1586 = vadd.xlane.f32.xlu0 %v1459
        %v1587 = vpop.xlane.xlu0 %1586
        %1588 = vadd.xlane.f32.xlu0 %v1461
        %v1589 = vpop.xlane.xlu0 %1588
        %1590 = vadd.xlane.f32.xlu0 %v1463
        %v1591 = vpop.xlane.xlu0 %1590
        %1592 = vadd.xlane.f32.xlu0 %v1465
        %v1593 = vpop.xlane.xlu0 %1592
        %1594 = vadd.xlane.f32.xlu0 %v1467
        %v1595 = vpop.xlane.xlu0 %1594
        %1596 = vadd.xlane.f32.xlu0 %v1469
        %v1597 = vpop.xlane.xlu0 %1596
        %1598 = vadd.xlane.f32.xlu0 %v1471
        %v1599 = vpop.xlane.xlu0 %1598
        %1600 = vadd.xlane.f32.xlu0 %v1473
        %v1601 = vpop.xlane.xlu0 %1600
        %1602 = vadd.xlane.f32.xlu0 %v1475
        %v1603 = vpop.xlane.xlu0 %1602
        %1604 = vadd.xlane.f32.xlu0 %v1477
        %v1605 = vpop.xlane.xlu0 %1604
        %1606 = vadd.xlane.f32.xlu0 %v1479
        %v1607 = vpop.xlane.xlu0 %1606
        %1608 = vadd.xlane.f32.xlu0 %v1481
        %v1609 = vpop.xlane.xlu0 %1608
        %1610 = vadd.xlane.f32.xlu0 %v1483
        %v1611 = vpop.xlane.xlu0 %1610
        %1612 = vadd.xlane.f32.xlu0 %v1485
        %v1613 = vpop.xlane.xlu0 %1612
        %1614 = vadd.xlane.f32.xlu0 %v1487
        %v1615 = vpop.xlane.xlu0 %1614
        %1616 = vadd.xlane.f32.xlu0 %v1489
        %v1617 = vpop.xlane.xlu0 %1616
        %1618 = vadd.xlane.f32.xlu0 %v1491
        %v1619 = vpop.xlane.xlu0 %1618
        %1620 = vadd.xlane.f32.xlu0 %v1493
        %v1621 = vpop.xlane.xlu0 %1620
        %1622 = vadd.xlane.f32.xlu0 %v1495
        %v1623 = vpop.xlane.xlu0 %1622
        %1624 = vadd.xlane.f32.xlu0 %v1497
        %v1625 = vpop.xlane.xlu0 %1624
        %1626 = vadd.xlane.f32.xlu0 %v1499
        %v1627 = vpop.xlane.xlu0 %1626
        %1628 = vadd.xlane.f32.xlu0 %v1501
        %v1629 = vpop.xlane.xlu0 %1628
        %1630 = vadd.xlane.f32.xlu0 %v1503
        %v1631 = vpop.xlane.xlu0 %1630
        %1632 = vadd.xlane.f32.xlu0 %v1505
        %v1633 = vpop.xlane.xlu0 %1632
        %1634 = vadd.xlane.f32.xlu0 %v1507
        %v1635 = vpop.xlane.xlu0 %1634
        %1636 = vadd.xlane.f32.xlu0 %v1509
        %v1637 = vpop.xlane.xlu0 %1636
        %1638 = vadd.xlane.f32.xlu0 %v1511
        %v1639 = vpop.xlane.xlu0 %1638
        %1640 = vadd.xlane.f32.xlu0 %v1513
        %v1641 = vpop.xlane.xlu0 %1640
        %1642 = vadd.xlane.f32.xlu0 %v1515
        %v1643 = vpop.xlane.xlu0 %1642
        %1644 = vadd.xlane.f32.xlu0 %v1517
        %v1645 = vpop.xlane.xlu0 %1644
        %1646 = vadd.xlane.f32.xlu0 %v1519
        %v1647 = vpop.xlane.xlu0 %1646
        %1648 = vadd.xlane.f32.xlu0 %v1521
        %v1649 = vpop.xlane.xlu0 %1648
        %1650 = vadd.xlane.f32.xlu0 %v1523
        %v1651 = vpop.xlane.xlu0 %1650
        %1652 = vadd.xlane.f32.xlu0 %v1525
        %v1653 = vpop.xlane.xlu0 %1652
        %1654 = vadd.xlane.f32.xlu0 %v1527
        %v1655 = vpop.xlane.xlu0 %1654
        %1656 = vadd.xlane.f32.xlu0 %v1529
        %v1657 = vpop.xlane.xlu0 %1656
        %1658 = vadd.xlane.f32.xlu0 %v1531
        %v1659 = vpop.xlane.xlu0 %1658
        %1660 = vadd.xlane.f32.xlu0 %v1533
        %v1661 = vpop.xlane.xlu0 %1660
        %1662 = vadd.xlane.f32.xlu0 %v1535
        %v1663 = vpop.xlane.xlu0 %1662
        %1664 = vadd.xlane.f32.xlu0 %v1537
        %v1665 = vpop.xlane.xlu0 %1664
        %1666 = vadd.xlane.f32.xlu0 %v1539
        %v1667 = vpop.xlane.xlu0 %1666
        %1668 = vadd.xlane.f32.xlu0 %v1541
        %v1669 = vpop.xlane.xlu0 %1668
        %1670 = vadd.xlane.f32.xlu0 %v1543
        %v1671 = vpop.xlane.xlu0 %1670
        %1672 = vadd.xlane.f32.xlu0 %v1545
        %v1673 = vpop.xlane.xlu0 %1672
        %1674 = vadd.xlane.f32.xlu0 %v1547
        %v1675 = vpop.xlane.xlu0 %1674
        %1676 = vadd.xlane.f32.xlu0 %v1549
        %v1677 = vpop.xlane.xlu0 %1676
        %1678 = vadd.xlane.f32.xlu0 %v1551
        %v1679 = vpop.xlane.xlu0 %1678
        %1680 = vadd.xlane.f32.xlu0 %v1553
        %v1681 = vpop.xlane.xlu0 %1680
        %1682 = vadd.xlane.f32.xlu0 %v1555
        %v1683 = vpop.xlane.xlu0 %1682
        %v1684 = vrcp.pop %v1557
        %v1685 = vrcp.pop %v1559
        %v1686 = vrcp.pop %v1561
        %v1687 = vrcp.pop %v1563
        %v1688 = vrcp.pop %v1565
        %v1689 = vrcp.pop %v1567
        %v1690 = vrcp.pop %v1569
        %v1691 = vrcp.pop %v1571
        %v1692 = vrcp.pop %v1573
        %v1693 = vrcp.pop %v1575
        %v1694 = vrcp.pop %v1577
        %v1695 = vrcp.pop %v1579
        %v1696 = vrcp.pop %v1581
        %v1697 = vrcp.pop %v1583
        %v1698 = vrcp.pop %v1585
        %v1699 = vrcp.pop %v1587
        %v1700 = vrcp.pop %v1589
        %v1701 = vrcp.pop %v1591
        %v1702 = vrcp.pop %v1593
        %v1703 = vrcp.pop %v1595
        %v1704 = vrcp.pop %v1597
        %v1705 = vrcp.pop %v1599
        %v1706 = vrcp.pop %v1601
        %v1707 = vrcp.pop %v1603
        %v1708 = vrcp.pop %v1605
        %v1709 = vrcp.pop %v1607
        %v1710 = vrcp.pop %v1609
        %v1711 = vrcp.pop %v1611
        %v1712 = vrcp.pop %v1613
        %v1713 = vrcp.pop %v1615
        %v1714 = vrcp.pop %v1617
        %v1715 = vrcp.pop %v1619
        %v1716 = vrcp.pop %v1621
        %v1717 = vrcp.pop %v1623
        %v1718 = vrcp.pop %v1625
        %v1719 = vrcp.pop %v1627
        %v1720 = vrcp.pop %v1629
        %v1721 = vrcp.pop %v1631
        %v1722 = vrcp.pop %v1633
        %v1723 = vrcp.pop %v1635
        %v1724 = vrcp.pop %v1637
        %v1725 = vrcp.pop %v1639
        %v1726 = vrcp.pop %v1641
        %v1727 = vrcp.pop %v1643
        %v1728 = vrcp.pop %v1645
        %v1729 = vrcp.pop %v1647
        %v1730 = vrcp.pop %v1649
        %v1731 = vrcp.pop %v1651
        %v1732 = vrcp.pop %v1653
        %v1733 = vrcp.pop %v1655
        %v1734 = vrcp.pop %v1657
        %v1735 = vrcp.pop %v1659
        %v1736 = vrcp.pop %v1661
        %v1737 = vrcp.pop %v1663
        %v1738 = vrcp.pop %v1665
        %v1739 = vrcp.pop %v1667
        %v1740 = vrcp.pop %v1669
        %v1741 = vrcp.pop %v1671
        %v1742 = vrcp.pop %v1673
        %v1743 = vrcp.pop %v1675
        %v1744 = vrcp.pop %v1677
        %v1745 = vrcp.pop %v1679
        %v1746 = vrcp.pop %v1681
        %v1747 = vrcp.pop %v1683
        %v1748 = vmul.f32 %v1429, %v1684
        %v1749 = vmul.f32 %v1431, %v1685
        %v1750 = vmul.f32 %v1433, %v1686
        %v1751 = vmul.f32 %v1435, %v1687
        %v1752 = vmul.f32 %v1437, %v1688
        %v1753 = vmul.f32 %v1439, %v1689
        %v1754 = vmul.f32 %v1441, %v1690
        %v1755 = vmul.f32 %v1443, %v1691
        %v1756 = vmul.f32 %v1445, %v1692
        %v1757 = vmul.f32 %v1447, %v1693
        %v1758 = vmul.f32 %v1449, %v1694
        %v1759 = vmul.f32 %v1451, %v1695
        %v1760 = vmul.f32 %v1453, %v1696
        %v1761 = vmul.f32 %v1455, %v1697
        %v1762 = vmul.f32 %v1457, %v1698
        %v1763 = vmul.f32 %v1459, %v1699
        %v1764 = vmul.f32 %v1461, %v1700
        %v1765 = vmul.f32 %v1463, %v1701
        %v1766 = vmul.f32 %v1465, %v1702
        %v1767 = vmul.f32 %v1467, %v1703
        %v1768 = vmul.f32 %v1469, %v1704
        %v1769 = vmul.f32 %v1471, %v1705
        %v1770 = vmul.f32 %v1473, %v1706
        %v1771 = vmul.f32 %v1475, %v1707
        %v1772 = vmul.f32 %v1477, %v1708
        %v1773 = vmul.f32 %v1479, %v1709
        %v1774 = vmul.f32 %v1481, %v1710
        %v1775 = vmul.f32 %v1483, %v1711
        %v1776 = vmul.f32 %v1485, %v1712
        %v1777 = vmul.f32 %v1487, %v1713
        %v1778 = vmul.f32 %v1489, %v1714
        %v1779 = vmul.f32 %v1491, %v1715
        %v1780 = vmul.f32 %v1493, %v1716
        %v1781 = vmul.f32 %v1495, %v1717
        %v1782 = vmul.f32 %v1497, %v1718
        %v1783 = vmul.f32 %v1499, %v1719
        %v1784 = vmul.f32 %v1501, %v1720
        %v1785 = vmul.f32 %v1503, %v1721
        %v1786 = vmul.f32 %v1505, %v1722
        %v1787 = vmul.f32 %v1507, %v1723
        %v1788 = vmul.f32 %v1509, %v1724
        %v1789 = vmul.f32 %v1511, %v1725
        %v1790 = vmul.f32 %v1513, %v1726
        %v1791 = vmul.f32 %v1515, %v1727
        %v1792 = vmul.f32 %v1517, %v1728
        %v1793 = vmul.f32 %v1519, %v1729
        %v1794 = vmul.f32 %v1521, %v1730
        %v1795 = vmul.f32 %v1523, %v1731
        %v1796 = vmul.f32 %v1525, %v1732
        %v1797 = vmul.f32 %v1527, %v1733
        %v1798 = vmul.f32 %v1529, %v1734
        %v1799 = vmul.f32 %v1531, %v1735
        %v1800 = vmul.f32 %v1533, %v1736
        %v1801 = vmul.f32 %v1535, %v1737
        %v1802 = vmul.f32 %v1537, %v1738
        %v1803 = vmul.f32 %v1539, %v1739
        %v1804 = vmul.f32 %v1541, %v1740
        %v1805 = vmul.f32 %v1543, %v1741
        %v1806 = vmul.f32 %v1545, %v1742
        %v1807 = vmul.f32 %v1547, %v1743
        %v1808 = vmul.f32 %v1549, %v1744
        %v1809 = vmul.f32 %v1551, %v1745
        %v1810 = vmul.f32 %v1553, %v1746
        %v1811 = vmul.f32 %v1555, %v1747
        %v1812 = vpack.c.bf16 %v1749, %v1748
        %v1813 = vpack.c.bf16 %v1751, %v1750
        %v1814 = vpack.c.bf16 %v1753, %v1752
        %v1815 = vpack.c.bf16 %v1755, %v1754
        %v1816 = vpack.c.bf16 %v1757, %v1756
        %v1817 = vpack.c.bf16 %v1759, %v1758
        %v1818 = vpack.c.bf16 %v1761, %v1760
        %v1819 = vpack.c.bf16 %v1763, %v1762
        %v1820 = vpack.c.bf16 %v1765, %v1764
        %v1821 = vpack.c.bf16 %v1767, %v1766
        %v1822 = vpack.c.bf16 %v1769, %v1768
        %v1823 = vpack.c.bf16 %v1771, %v1770
        %v1824 = vpack.c.bf16 %v1773, %v1772
        %v1825 = vpack.c.bf16 %v1775, %v1774
        %v1826 = vpack.c.bf16 %v1777, %v1776
        %v1827 = vpack.c.bf16 %v1779, %v1778
        %v1828 = vpack.c.bf16 %v1781, %v1780
        %v1829 = vpack.c.bf16 %v1783, %v1782
        %v1830 = vpack.c.bf16 %v1785, %v1784
        %v1831 = vpack.c.bf16 %v1787, %v1786
        %v1832 = vpack.c.bf16 %v1789, %v1788
        %v1833 = vpack.c.bf16 %v1791, %v1790
        %v1834 = vpack.c.bf16 %v1793, %v1792
        %v1835 = vpack.c.bf16 %v1795, %v1794
        %v1836 = vpack.c.bf16 %v1797, %v1796
        %v1837 = vpack.c.bf16 %v1799, %v1798
        %v1838 = vpack.c.bf16 %v1801, %v1800
        %v1839 = vpack.c.bf16 %v1803, %v1802
        %v1840 = vpack.c.bf16 %v1805, %v1804
        %v1841 = vpack.c.bf16 %v1807, %v1806
        %v1842 = vpack.c.bf16 %v1809, %v1808
        %v1843 = vpack.c.bf16 %v1811, %v1810
        %1844 = vmatprep.subr.bf16.mxu0 0
        %1845 = vmatpush1.bf16.msra.mxu0 %v1812
        %1846 = vmatprep.subr.bf16.mxu0 0
        %1847 = vmatpush1.bf16.msra.mxu0 %v1813
        %1848 = vmatprep.subr.bf16.mxu0 0
        %1849 = vmatpush1.bf16.msra.mxu0 %v1814
        %1850 = vmatprep.subr.bf16.mxu0 0
        %1851 = vmatpush1.bf16.msra.mxu0 %v1815
        %1852 = vmatprep.subr.bf16.mxu0 0
        %1853 = vmatpush1.bf16.msra.mxu0 %v1816
        %1854 = vmatprep.subr.bf16.mxu0 0
        %1855 = vmatpush1.bf16.msra.mxu0 %v1817
        %1856 = vmatprep.subr.bf16.mxu0 0
        %1857 = vmatpush1.bf16.msra.mxu0 %v1818
        %1858 = vmatprep.subr.bf16.mxu0 0
        %1859 = vmatpush1.bf16.msra.mxu0 %v1819
        %1860 = vmatprep.subr.bf16.mxu0 0
        %1861 = vmatpush1.bf16.msra.mxu0 0
        %1862 = vmatprep.subr.bf16.mxu0 0
        %1863 = vmatpush1.bf16.msra.mxu0 0
        %1864 = vmatprep.subr.bf16.mxu0 0
        %1865 = vmatpush1.bf16.msra.mxu0 0
        %1866 = vmatprep.subr.bf16.mxu0 0
        %1867 = vmatpush1.bf16.msra.mxu0 0
        %1868 = vmatprep.subr.bf16.mxu0 0
        %1869 = vmatpush1.bf16.msra.mxu0 0
        %1870 = vmatprep.subr.bf16.mxu0 0
        %1871 = vmatpush1.bf16.msra.mxu0 0
        %1872 = vmatprep.subr.bf16.mxu0 0
        %1873 = vmatpush1.bf16.msra.mxu0 0
        %1874 = vmatprep.subr.bf16.mxu0 0
        %1875 = vmatpush1.bf16.msra.mxu0 0
        %1876 = vmatprep.mubr.bf16.mxu0 0
        %1877 = vmatmul.mubr.bf16.gmra.mrb[0].mxu0 %v666
        %v1878 = vpop.f32.mrb[0].mxu0
        %v1879 = vadd.f32 0.0, %v1878
        %v1880 = vpop.f32.mrb[0].mxu0
        %v1881 = vpop.f32.mrb[0].mxu0
        %v1882 = vadd.f32 0.0, %v1881
        %v1883 = vpop.f32.mrb[0].mxu0
        %1884 = vmatprep.mubr.bf16.mxu0 0
        %1885 = vmatmul.mubr.bf16.gmra.mrb[0].mxu0 %v667
        %v1886 = vpop.f32.mrb[0].mxu0
        %v1887 = vadd.f32 0.0, %v1886
        %v1888 = vpop.f32.mrb[0].mxu0
        %v1889 = vpop.f32.mrb[0].mxu0
        %v1890 = vadd.f32 0.0, %v1889
        %v1891 = vpop.f32.mrb[0].mxu0
        %1892 = vdwg.mxu0
        %1893 = vmatprep.subr.bf16.mxu0 0
        %1894 = vmatpush1.bf16.msra.mxu0 %v1820
        %1895 = vmatprep.subr.bf16.mxu0 0
        %1896 = vmatpush1.bf16.msra.mxu0 %v1821
        %1897 = vmatprep.subr.bf16.mxu0 0
        %1898 = vmatpush1.bf16.msra.mxu0 %v1822
        %1899 = vmatprep.subr.bf16.mxu0 0
        %1900 = vmatpush1.bf16.msra.mxu0 %v1823
        %1901 = vmatprep.subr.bf16.mxu0 0
        %1902 = vmatpush1.bf16.msra.mxu0 %v1824
        %1903 = vmatprep.subr.bf16.mxu0 0
        %1904 = vmatpush1.bf16.msra.mxu0 %v1825
        %1905 = vmatprep.subr.bf16.mxu0 0
        %1906 = vmatpush1.bf16.msra.mxu0 %v1826
        %1907 = vmatprep.subr.bf16.mxu0 0
        %1908 = vmatpush1.bf16.msra.mxu0 %v1827
        %1909 = vmatprep.subr.bf16.mxu0 0
        %1910 = vmatpush1.bf16.msra.mxu0 0
        %1911 = vmatprep.subr.bf16.mxu0 0
        %1912 = vmatpush1.bf16.msra.mxu0 0
        %1913 = vmatprep.subr.bf16.mxu0 0
        %1914 = vmatpush1.bf16.msra.mxu0 0
        %1915 = vmatprep.subr.bf16.mxu0 0
        %1916 = vmatpush1.bf16.msra.mxu0 0
        %1917 = vmatprep.subr.bf16.mxu0 0
        %1918 = vmatpush1.bf16.msra.mxu0 0
        %1919 = vmatprep.subr.bf16.mxu0 0
        %1920 = vmatpush1.bf16.msra.mxu0 0
        %1921 = vmatprep.subr.bf16.mxu0 0
        %1922 = vmatpush1.bf16.msra.mxu0 0
        %1923 = vmatprep.subr.bf16.mxu0 0
        %1924 = vmatpush1.bf16.msra.mxu0 0
        %1925 = vmatprep.mubr.bf16.mxu0 0
        %1926 = vmatmul.mubr.bf16.gmra.mrb[0].mxu0 %v668
        %v1927 = vpop.f32.mrb[0].mxu0
        %v1928 = vadd.f32 0.0, %v1927
        %v1929 = vpop.f32.mrb[0].mxu0
        %v1930 = vpop.f32.mrb[0].mxu0
        %v1931 = vadd.f32 0.0, %v1930
        %v1932 = vpop.f32.mrb[0].mxu0
        %1933 = vmatprep.mubr.bf16.mxu0 0
        %1934 = vmatmul.mubr.bf16.gmra.mrb[0].mxu0 %v669
        %v1935 = vpop.f32.mrb[0].mxu0
        %v1936 = vadd.f32 0.0, %v1935
        %v1937 = vpop.f32.mrb[0].mxu0
        %v1938 = vpop.f32.mrb[0].mxu0
        %v1939 = vadd.f32 0.0, %v1938
        %v1940 = vpop.f32.mrb[0].mxu0
        %1941 = vdwg.mxu0
        %1942 = vmatprep.subr.bf16.mxu0 0
        %1943 = vmatpush1.bf16.msra.mxu0 %v1828
        %1944 = vmatprep.subr.bf16.mxu0 0
        %1945 = vmatpush1.bf16.msra.mxu0 %v1829
        %1946 = vmatprep.subr.bf16.mxu0 0
        %1947 = vmatpush1.bf16.msra.mxu0 %v1830
        %1948 = vmatprep.subr.bf16.mxu0 0
        %1949 = vmatpush1.bf16.msra.mxu0 %v1831
        %1950 = vmatprep.subr.bf16.mxu0 0
        %1951 = vmatpush1.bf16.msra.mxu0 %v1832
        %1952 = vmatprep.subr.bf16.mxu0 0
        %1953 = vmatpush1.bf16.msra.mxu0 %v1833
        %1954 = vmatprep.subr.bf16.mxu0 0
        %1955 = vmatpush1.bf16.msra.mxu0 %v1834
        %1956 = vmatprep.subr.bf16.mxu0 0
        %1957 = vmatpush1.bf16.msra.mxu0 %v1835
        %1958 = vmatprep.subr.bf16.mxu0 0
        %1959 = vmatpush1.bf16.msra.mxu0 0
        %1960 = vmatprep.subr.bf16.mxu0 0
        %1961 = vmatpush1.bf16.msra.mxu0 0
        %1962 = vmatprep.subr.bf16.mxu0 0
        %1963 = vmatpush1.bf16.msra.mxu0 0
        %1964 = vmatprep.subr.bf16.mxu0 0
        %1965 = vmatpush1.bf16.msra.mxu0 0
        %1966 = vmatprep.subr.bf16.mxu0 0
        %1967 = vmatpush1.bf16.msra.mxu0 0
        %1968 = vmatprep.subr.bf16.mxu0 0
        %1969 = vmatpush1.bf16.msra.mxu0 0
        %1970 = vmatprep.subr.bf16.mxu0 0
        %1971 = vmatpush1.bf16.msra.mxu0 0
        %1972 = vmatprep.subr.bf16.mxu0 0
        %1973 = vmatpush1.bf16.msra.mxu0 0
        %1974 = vmatprep.mubr.bf16.mxu0 0
        %1975 = vmatmul.mubr.bf16.gmra.mrb[0].mxu0 %v670
        %v1976 = vpop.f32.mrb[0].mxu0
        %v1977 = vadd.f32 0.0, %v1976
        %v1978 = vpop.f32.mrb[0].mxu0
        %v1979 = vpop.f32.mrb[0].mxu0
        %v1980 = vadd.f32 0.0, %v1979
        %v1981 = vpop.f32.mrb[0].mxu0
        %1982 = vmatprep.mubr.bf16.mxu0 0
        %1983 = vmatmul.mubr.bf16.gmra.mrb[0].mxu0 %v671
        %v1984 = vpop.f32.mrb[0].mxu0
        %v1985 = vadd.f32 0.0, %v1984
        %v1986 = vpop.f32.mrb[0].mxu0
        %v1987 = vpop.f32.mrb[0].mxu0
        %v1988 = vadd.f32 0.0, %v1987
        %v1989 = vpop.f32.mrb[0].mxu0
        %1990 = vdwg.mxu0
        %1991 = vmatprep.subr.bf16.mxu0 0
        %1992 = vmatpush1.bf16.msra.mxu0 %v1836
        %1993 = vmatprep.subr.bf16.mxu0 0
        %1994 = vmatpush1.bf16.msra.mxu0 %v1837
        %1995 = vmatprep.subr.bf16.mxu0 0
        %1996 = vmatpush1.bf16.msra.mxu0 %v1838
        %1997 = vmatprep.subr.bf16.mxu0 0
        %1998 = vmatpush1.bf16.msra.mxu0 %v1839
        %1999 = vmatprep.subr.bf16.mxu0 0
        %2000 = vmatpush1.bf16.msra.mxu0 %v1840
        %2001 = vmatprep.subr.bf16.mxu0 0
        %2002 = vmatpush1.bf16.msra.mxu0 %v1841
        %2003 = vmatprep.subr.bf16.mxu0 0
        %2004 = vmatpush1.bf16.msra.mxu0 %v1842
        %2005 = vmatprep.subr.bf16.mxu0 0
        %2006 = vmatpush1.bf16.msra.mxu0 %v1843
        %2007 = vmatprep.subr.bf16.mxu0 0
        %2008 = vmatpush1.bf16.msra.mxu0 0
        %2009 = vmatprep.subr.bf16.mxu0 0
        %2010 = vmatpush1.bf16.msra.mxu0 0
        %2011 = vmatprep.subr.bf16.mxu0 0
        %2012 = vmatpush1.bf16.msra.mxu0 0
        %2013 = vmatprep.subr.bf16.mxu0 0
        %2014 = vmatpush1.bf16.msra.mxu0 0
        %2015 = vmatprep.subr.bf16.mxu0 0
        %2016 = vmatpush1.bf16.msra.mxu0 0
        %2017 = vmatprep.subr.bf16.mxu0 0
        %2018 = vmatpush1.bf16.msra.mxu0 0
        %2019 = vmatprep.subr.bf16.mxu0 0
        %2020 = vmatpush1.bf16.msra.mxu0 0
        %2021 = vmatprep.subr.bf16.mxu0 0
        %2022 = vmatpush1.bf16.msra.mxu0 0
        %2023 = vmatprep.mubr.bf16.mxu0 0
        %2024 = vmatmul.mubr.bf16.gmra.mrb[0].mxu0 %v672
        %v2025 = vpop.f32.mrb[0].mxu0
        %v2026 = vadd.f32 0.0, %v2025
        %v2027 = vpop.f32.mrb[0].mxu0
        %v2028 = vpop.f32.mrb[0].mxu0
        %v2029 = vadd.f32 0.0, %v2028
        %v2030 = vpop.f32.mrb[0].mxu0
        %2031 = vmatprep.mubr.bf16.mxu0 0
        %2032 = vmatmul.mubr.bf16.gmra.mrb[0].mxu0 %v673
        %v2033 = vpop.f32.mrb[0].mxu0
        %v2034 = vadd.f32 0.0, %v2033
        %v2035 = vpop.f32.mrb[0].mxu0
        %v2036 = vpop.f32.mrb[0].mxu0
        %v2037 = vadd.f32 0.0, %v2036
        %v2038 = vpop.f32.mrb[0].mxu0
        %2039 = vdwg.mxu0
        %v2040 = vmul.f32 %v278, 2.0
        %v2041 = vmul.f32 %v279, 2.0
        %v2042 = vmul.f32 %v280, 2.0
        %v2043 = vmul.f32 %v281, 2.0
        %v2044 = vadd.f32 %v1879, %v1928
        %v2045 = vadd.f32 %v2044, %v1977
        %v2046 = vadd.f32 %v2045, %v2026
        %v2047 = vadd.f32 %v1882, %v1931
        %v2048 = vadd.f32 %v2047, %v1980
        %v2049 = vadd.f32 %v2048, %v2029
        %v2050 = vadd.f32 %v1887, %v1936
        %v2051 = vadd.f32 %v2050, %v1985
        %v2052 = vadd.f32 %v2051, %v2034
        %v2053 = vadd.f32 %v1890, %v1939
        %v2054 = vadd.f32 %v2053, %v1988
        %v2055 = vadd.f32 %v2054, %v2037
        %v2056 = vadd.f32 %v2040, %v2046
        %v2057 = vadd.f32 %v2041, %v2049
        %v2058 = vadd.f32 %v2042, %v2052
        %v2059 = vadd.f32 %v2043, %v2055
        %2060 = vst [vmem:[%s271] sm:$0xff] %v2056
        %2061 = vst [vmem:[%s271 + $0x8] sm:$0xff] %v2057
        %2062 = vst [vmem:[%s271 + $0x10] sm:$0xff] %v2058
        %2063 = vst [vmem:[%s271 + $0x18] sm:$0xff] %v2059
        %s2064 = sand.u32 %s181, 1
        %s2065 = scalar_lea.sflag [#allocation3], %s2064
        %s2066 = sand.u32 %s181, 1
        %s2067 = smul.addr %s2066, 32
        %s2068 = scalar_lea.vmem [#allocation2], %s2067
        // Predicated region
        $region49: #{tpu_custom_call.1} parent=47 // pred_check
          %p2069 = pneg %p191
        $region50: #{tpu_custom_call.1} parent=47 // pred_check_branch
          %2071 = sbr.rel (%p2069) target = $region52
        $region51: #{tpu_custom_call.1} parent=47 // pred_region
          %s2073 = ssub.s32 512, 512
          %2074 = vsyncadd %s2065, %s2073
          %s2075 = smul.addr %s21, 4
          %s2076 = smul.addr %s2075, 128
          %s2077 = scalar_lea.hbm %s7, %s2076
          %s2078 = sshll.u32 %s2068, 4
          %s2079 = int_to_ptr.vmem [resolvable:$true] %s2078
          %2084 = dma.vmem_to_hbm [thread:$0]  %s2079, 512, %s2077, %s2065, 128, 128, 8
        $region52: #{tpu_custom_call.1} parent=47 // pred_fallthru
          _
      $region48: #{tpu_custom_call.1} parent=5 // pred_fallthru
        _
      %p2085 = scmp.le.s32.totalorder 2, %s16
      // Predicated region
      $region53: #{tpu_custom_call.1} parent=5 // pred_check
        %p2086 = pneg %p2085
      $region54: #{tpu_custom_call.1} parent=5 // pred_check_branch
        %2088 = sbr.rel (%p2086) target = $region56
      $region55: #{tpu_custom_call.1} parent=5 // pred_region
        %s2089 = ssub.s32 %s16, 2
        // Predicated region
        $region57: #{tpu_custom_call.1} parent=55 // pred_check
          %p2090 = pneg %p197
        $region58: #{tpu_custom_call.1} parent=55 // pred_check_branch
          %2092 = sbr.rel (%p2090) target = $region60
        $region59: #{tpu_custom_call.1} parent=55 // pred_region
          %s2093 = sand.u32 %s182, 1
          %s2094 = scalar_lea.sflag [#allocation3], %s2093
          %s2095 = sand.u32 %s182, 1
          %s2096 = smul.addr %s2095, 32
          %s2097 = scalar_lea.vmem [#allocation2], %s2096
          %2098 = dma.done %s2094, 512
        $region60: #{tpu_custom_call.1} parent=55 // pred_fallthru
          _
      $region56: #{tpu_custom_call.1} parent=5 // pred_fallthru
        _
    $region6: #{tpu_custom_call.1} parent=1 // loop_footer
      %s20 = sadd.s32 1, %s16
    $region7: #{tpu_custom_call.1} parent=1 // loop_footer_branch
      %15 = sbr.rel target = $region3
    $region8: #{tpu_custom_call.1} parent=1 // loop_exit
      _
    %2099 = vsyncpa [#allocation3], 1
    %s2100 = scalar_lea.sflag [#allocation3], 1
    %2101 = vsyncpa %s2100, 1

</llo_original>
